<compile_context>
chip_gen: v7x
topology: tpu7x:2x2x1
jax: 0.10.0
libtpu: 0.0.40
codegen_flags: <defaults>
</compile_context>

<pallas_src>
import functools

import jax
import jax.numpy as jnp
from jax import lax
from jax.experimental import pallas as pl
from jax.experimental.pallas import tpu as pltpu

BN_EPS = 1e-5       # nn.BatchNorm1d default eps
NORM_EPS = 1e-12    # F.normalize default eps
LAMDA = 1.0
MU = 1.0
LOG_ORDER = 4       # fixed 4-term Taylor expansion (matches matrix_log(order=4))


def matrixssl_fused_kernel(x1_ref, x2_ref, wb_ref, wproj_ref, wpred_ref, out_ref, *, gamma):
    b = x1_ref.shape[0]
    emb = wpred_ref.shape[1]
    inv_b = 1.0 / float(b)
    inv_m = 1.0 / float(emb)   # "m" of mce_loss_func = rows of the transposed inputs = emb

    def bn_views(y):
        # training-mode BatchNorm1d (weight=1, bias=0, biased var) applied independently
        # to rows [0:b] (view 1) and [b:2b] (view 2); single-pass sum / sum-of-squares.
        y3 = y.reshape(2, b, y.shape[1])
        s = jnp.sum(y3, axis=1, keepdims=True)
        s2 = jnp.sum(y3 * y3, axis=1, keepdims=True)
        mean = s * inv_b
        var = s2 * inv_b - mean * mean
        return ((y3 - mean) * lax.rsqrt(var + BN_EPS)).reshape(2 * b, y.shape[1])

    # ---- forward: both views stacked on the sublane axis, one matmul per layer ----
    x = jnp.concatenate([x1_ref[...], x2_ref[...]], axis=0)                   # (2B, in)
    h = jnp.dot(x, wb_ref[...], preferred_element_type=jnp.float32)           # (2B, emb)
    proj = bn_views(jnp.dot(h, wproj_ref[...],
                            preferred_element_type=jnp.float32))              # (2B, 2*emb)
    u = proj[:, :emb]                                                          # online projector out
    p_stack = proj[:, emb:]                                                    # target branch [p1; p2]
    z_stack = bn_views(jnp.dot(u, wpred_ref[...],
                               preferred_element_type=jnp.float32))           # online out [z1; z2]

    # identity mask built once, reused for all diagonal extractions
    row = lax.broadcasted_iota(jnp.int32, (b, b), 0)
    col = lax.broadcasted_iota(jnp.int32, (b, b), 1)
    eye = (row == col).astype(jnp.float32)

    def mce_pair(p, z):
        # p, z: (B, emb). Equals mce_loss_func(p.T, z.T, correlation=True) and (.., False).
        s = jnp.concatenate([p, z], axis=0)                                    # (2B, emb)
        s3 = s.reshape(2, b, emb)
        ss = jnp.sum(s3 * s3, axis=1, keepdims=True)                           # per-view column sq-norms
        sn = (s3 * lax.rsqrt(jnp.maximum(ss, NORM_EPS * NORM_EPS))).reshape(2 * b, emb)  # [pn; zn]
        sc = sn - jnp.mean(sn, axis=1, keepdims=True)                          # J_m centering -> [pc; zc]

        # fused Gram: [pn; zn] @ [pc; zc]^T ; quadrants: TL = pn pc^T, TR = pn zc^T, BR = zn zc^T
        g = inv_m * lax.dot_general(sn, sc, (((1,), (1,)), ((), ())),
                                    preferred_element_type=jnp.float32)        # (2B, 2B)
        gp = g[:b, :b]          # 1/m * p^T J p       (P_nc = gp + MU*I)
        xc = g[:b, b:]          # Q_corr - I          (MU == 1)
        xn = g[b:, b:]          # Q_nc   - I          (MU == 1)
        if MU != 1.0:           # trace-time constant; folds away for the default MU
            xc = xc + (MU - 1.0) * eye
            xn = xn + (MU - 1.0) * eye

        # correlation term: trace-only 4-term Taylor log -> a single (B,B) matmul
        xc2 = jnp.dot(xc, xc, preferred_element_type=jnp.float32)
        xct = xc.T                                        # XLU work, overlaps with MXU
        tr1 = jnp.sum(eye * xc)
        tr2 = jnp.sum(eye * xc2)                          # tr(X^2)
        tr3 = jnp.sum(xc2 * xct)                          # tr(X^3) = sum(X2 * X.T)
        tr4 = jnp.sum(xc2 * xc2.T)                        # tr(X^4) = sum(X2 * X2.T)
        loss_corr = -LAMDA * (tr1 - 0.5 * tr2 + (1.0 / 3.0) * tr3 - 0.25 * tr4)

        # non-correlation term: full logQ needed (P is not a multiple of I)
        xn2 = jnp.dot(xn, xn, preferred_element_type=jnp.float32)
        xn3 = jnp.dot(xn2, xn, preferred_element_type=jnp.float32)
        xn4 = jnp.dot(xn2, xn2, preferred_element_type=jnp.float32)
        log_qn = xn - 0.5 * xn2 + (1.0 / 3.0) * xn3 - 0.25 * xn4
        # trace(-P @ logQ), both symmetric -> -sum(P * logQ); MU*I part folded as a trace
        loss_nc = -jnp.sum(gp * log_qn) - MU * jnp.sum(eye * log_qn)
        return loss_corr, loss_nc

    corr_a, nc_a = mce_pair(p_stack[b:], z_stack[:b])    # mce(p2, z1)
    corr_b, nc_b = mce_pair(p_stack[:b], z_stack[b:])    # mce(p1, z2)
    out_ref[0] = 0.5 * (corr_a + corr_b + gamma * (nc_a + nc_b))


def prepare_params(params):
    """One-time weight prep (call at init, NOT per step): pre-transpose every Linear
    weight to (in_features, out_features) and concatenate the online/target projector
    weights along the output (lane) axis."""
    return {
        "wb": jnp.asarray(params["backbone"]).T,
        "wproj": jnp.concatenate(
            [jnp.asarray(params["proj_online"]).T, jnp.asarray(params["proj_target"]).T],
            axis=1),
        "wpred": jnp.asarray(params["predictor"]).T,
    }


@functools.partial(jax.jit, static_argnames=("gamma",))
def matrixssl_forward(x1, x2, prepped, gamma=1.0):
    loss_vec = pl.pallas_call(
        functools.partial(matrixssl_fused_kernel, gamma=float(gamma)),
        out_shape=jax.ShapeDtypeStruct((1,), jnp.float32),
        in_specs=[pl.BlockSpec(memory_space=pltpu.MemorySpace.VMEM)] * 5,
        out_specs=pl.BlockSpec(memory_space=pltpu.MemorySpace.SMEM),
    )(x1, x2, prepped["wb"], prepped["wproj"], prepped["wpred"])
    return {"loss": loss_vec[0], "d_dict": []}


# ---------------- pure-JAX reference (mirrors the PyTorch code) ----------------
def _ref_forward(x1, x2, params, gamma=1.0):
    def bn(y):
        mean = y.mean(0, keepdims=True)
        var = ((y - mean) ** 2).mean(0, keepdims=True)
        return (y - mean) / jnp.sqrt(var + BN_EPS)

    def online(x):
        h = x @ params["backbone"].T
        u = bn(h @ params["proj_online"].T)
        return bn(u @ params["predictor"].T)

    def target(x):
        h = x @ params["backbone"].T
        return bn(h @ params["proj_target"].T)

    def mce(p, z, correlation):
        p = p / jnp.maximum(jnp.linalg.norm(p, axis=1, keepdims=True), NORM_EPS)
        z = z / jnp.maximum(jnp.linalg.norm(z, axis=1, keepdims=True), NORM_EPS)
        m, n = z.shape
        J = jnp.eye(m) - jnp.ones((m, m)) / m
        mu_i = MU * jnp.eye(n)
        if correlation:
            P = LAMDA * jnp.eye(n)
            Q = (p.T @ J @ z) / m + mu_i
        else:
            P = (p.T @ J @ p) / m + mu_i
            Q = (z.T @ J @ z) / m + mu_i
        X = Q - jnp.eye(n)
        series = jnp.zeros_like(Q)
        summand = X
        for i in range(1, LOG_ORDER + 1):
            series = series + ((1.0 / i) if i % 2 == 1 else (-1.0 / i)) * summand
            summand = summand @ X
        return jnp.trace(-P @ series)

    z1, z2 = online(x1), online(x2)
    p1, p2 = target(x1), target(x2)
    return 0.5 * (mce(p2.T, z1.T, True) + mce(p1.T, z2.T, True)
                  + gamma * mce(p2.T, z1.T, False) + gamma * mce(p1.T, z2.T, False))


if __name__ == "__main__":
    key = jax.random.PRNGKey(0)
    B, IN_DIM, EMB_DIM = 8, 16, 32
    GAMMA = 1.0

    ks = jax.random.split(key, 6)
    x1 = jax.random.normal(ks[0], (B, IN_DIM), jnp.float32)
    x2 = jax.random.normal(ks[1], (B, IN_DIM), jnp.float32)

    params = {
        # backbone Linear(IN_DIM, EMB_DIM, bias=False); deepcopy -> same weights online/target
        "backbone": 0.1 * jax.random.normal(ks[2], (EMB_DIM, IN_DIM), jnp.float32),
        "proj_online": 0.1 * jax.random.normal(ks[3], (EMB_DIM, EMB_DIM), jnp.float32),
        "proj_target": 0.1 * jax.random.normal(ks[4], (EMB_DIM, EMB_DIM), jnp.float32),
        "predictor": 0.1 * jax.random.normal(ks[5], (EMB_DIM, EMB_DIM), jnp.float32),
    }

    prepped = prepare_params(params)   # one-time weight prep (transpose + projector concat)

    out = matrixssl_forward(x1, x2, prepped, gamma=GAMMA)
    loss = jax.block_until_ready(out["loss"])

    ref = jax.block_until_ready(_ref_forward(x1, x2, params, gamma=GAMMA))
    assert jnp.isfinite(loss), "non-finite loss"
    assert jnp.allclose(loss, ref, rtol=1e-3, atol=1e-3), (loss, ref)

    print("KERNEL_OK")
</pallas_src>

<mosaic_0001>
module attributes {stable_mosaic.version = 11 : i64} {
  func.func @matrixssl_fused_kernel(%arg0: memref<8x16xf32, #tpu.memory_space<vmem>>, %arg1: memref<8x16xf32, #tpu.memory_space<vmem>>, %arg2: memref<16x32xf32, #tpu.memory_space<vmem>>, %arg3: memref<32x64xf32, #tpu.memory_space<vmem>>, %arg4: memref<32x32xf32, #tpu.memory_space<vmem>>, %arg5: memref<1xf32, #tpu.memory_space<smem>>) attributes {dimension_semantics = [], scalar_prefetch = 0 : i64, scratch_operands = 0 : i64, tpu.core_type = #tpu.core_type<tc>} {
    %c0 = arith.constant 0 : index
    %c0_0 = arith.constant 0 : index
    %0 = vector.load %arg0[%c0, %c0_0] : memref<8x16xf32, #tpu.memory_space<vmem>>, vector<8x16xf32>
    %c0_1 = arith.constant 0 : index
    %c0_2 = arith.constant 0 : index
    %1 = vector.load %arg1[%c0_1, %c0_2] : memref<8x16xf32, #tpu.memory_space<vmem>>, vector<8x16xf32>
    %2 = tpu.concatenate %0, %1 in 0 : vector<8x16xf32>, vector<8x16xf32> -> vector<16x16xf32>
    %c0_3 = arith.constant 0 : index
    %c0_4 = arith.constant 0 : index
    %3 = vector.load %arg2[%c0_3, %c0_4] : memref<16x32xf32, #tpu.memory_space<vmem>>, vector<16x32xf32>
    %cst = arith.constant dense<0.000000e+00> : vector<16x32xf32>
    %4 = tpu.matmul %2, %3, %cst {dimension_numbers = #tpu.dot_dimension_numbers<[1], [0], [0], [1], [0, 0, 1, 1], [], []>} : vector<16x16xf32>, vector<16x32xf32>, vector<16x32xf32> -> vector<16x32xf32>
    %c0_5 = arith.constant 0 : index
    %c0_6 = arith.constant 0 : index
    %5 = vector.load %arg3[%c0_5, %c0_6] : memref<32x64xf32, #tpu.memory_space<vmem>>, vector<32x64xf32>
    %cst_7 = arith.constant dense<0.000000e+00> : vector<16x64xf32>
    %6 = tpu.matmul %4, %5, %cst_7 {dimension_numbers = #tpu.dot_dimension_numbers<[1], [0], [0], [1], [0, 0, 1, 1], [], []>} : vector<16x32xf32>, vector<32x64xf32>, vector<16x64xf32> -> vector<16x64xf32>
    %7 = vector.shape_cast %6 : vector<16x64xf32> to vector<2x8x64xf32>
    %cst_8 = arith.constant dense<0.000000e+00> : vector<2x64xf32>
    %8 = vector.multi_reduction <add>, %7, %cst_8 [1] : vector<2x8x64xf32> to vector<2x64xf32>
    %9 = vector.shape_cast %8 : vector<2x64xf32> to vector<2x1x64xf32>
    %10 = arith.mulf %7, %7 : vector<2x8x64xf32>
    %cst_9 = arith.constant dense<0.000000e+00> : vector<2x64xf32>
    %11 = vector.multi_reduction <add>, %10, %cst_9 [1] : vector<2x8x64xf32> to vector<2x64xf32>
    %12 = vector.shape_cast %11 : vector<2x64xf32> to vector<2x1x64xf32>
    %cst_10 = arith.constant 1.250000e-01 : f32
    %13 = vector.broadcast %cst_10 : f32 to vector<2x1x64xf32>
    %14 = arith.mulf %9, %13 : vector<2x1x64xf32>
    %cst_11 = arith.constant 1.250000e-01 : f32
    %15 = vector.broadcast %cst_11 : f32 to vector<2x1x64xf32>
    %16 = arith.mulf %12, %15 : vector<2x1x64xf32>
    %17 = arith.mulf %14, %14 : vector<2x1x64xf32>
    %18 = arith.subf %16, %17 : vector<2x1x64xf32>
    %19 = vector.broadcast %14 : vector<2x1x64xf32> to vector<2x8x64xf32>
    %20 = arith.subf %7, %19 : vector<2x8x64xf32>
    %cst_12 = arith.constant 9.99999974E-6 : f32
    %21 = vector.broadcast %cst_12 : f32 to vector<2x1x64xf32>
    %22 = arith.addf %18, %21 : vector<2x1x64xf32>
    %23 = math.rsqrt %22 : vector<2x1x64xf32>
    %24 = vector.broadcast %23 : vector<2x1x64xf32> to vector<2x8x64xf32>
    %25 = arith.mulf %20, %24 : vector<2x8x64xf32>
    %26 = vector.shape_cast %25 : vector<2x8x64xf32> to vector<16x64xf32>
    %27 = vector.extract_strided_slice %26 {offsets = [0, 0], sizes = [16, 32], strides = [1, 1]} : vector<16x64xf32> to vector<16x32xf32>
    %28 = vector.extract_strided_slice %26 {offsets = [0, 32], sizes = [16, 32], strides = [1, 1]} : vector<16x64xf32> to vector<16x32xf32>
    %c0_13 = arith.constant 0 : index
    %c0_14 = arith.constant 0 : index
    %29 = vector.load %arg4[%c0_13, %c0_14] : memref<32x32xf32, #tpu.memory_space<vmem>>, vector<32x32xf32>
    %cst_15 = arith.constant dense<0.000000e+00> : vector<16x32xf32>
    %30 = tpu.matmul %27, %29, %cst_15 {dimension_numbers = #tpu.dot_dimension_numbers<[1], [0], [0], [1], [0, 0, 1, 1], [], []>} : vector<16x32xf32>, vector<32x32xf32>, vector<16x32xf32> -> vector<16x32xf32>
    %31 = vector.shape_cast %30 : vector<16x32xf32> to vector<2x8x32xf32>
    %cst_16 = arith.constant dense<0.000000e+00> : vector<2x32xf32>
    %32 = vector.multi_reduction <add>, %31, %cst_16 [1] : vector<2x8x32xf32> to vector<2x32xf32>
    %33 = vector.shape_cast %32 : vector<2x32xf32> to vector<2x1x32xf32>
    %34 = arith.mulf %31, %31 : vector<2x8x32xf32>
    %cst_17 = arith.constant dense<0.000000e+00> : vector<2x32xf32>
    %35 = vector.multi_reduction <add>, %34, %cst_17 [1] : vector<2x8x32xf32> to vector<2x32xf32>
    %36 = vector.shape_cast %35 : vector<2x32xf32> to vector<2x1x32xf32>
    %cst_18 = arith.constant 1.250000e-01 : f32
    %37 = vector.broadcast %cst_18 : f32 to vector<2x1x32xf32>
    %38 = arith.mulf %33, %37 : vector<2x1x32xf32>
    %cst_19 = arith.constant 1.250000e-01 : f32
    %39 = vector.broadcast %cst_19 : f32 to vector<2x1x32xf32>
    %40 = arith.mulf %36, %39 : vector<2x1x32xf32>
    %41 = arith.mulf %38, %38 : vector<2x1x32xf32>
    %42 = arith.subf %40, %41 : vector<2x1x32xf32>
    %43 = vector.broadcast %38 : vector<2x1x32xf32> to vector<2x8x32xf32>
    %44 = arith.subf %31, %43 : vector<2x8x32xf32>
    %cst_20 = arith.constant 9.99999974E-6 : f32
    %45 = vector.broadcast %cst_20 : f32 to vector<2x1x32xf32>
    %46 = arith.addf %42, %45 : vector<2x1x32xf32>
    %47 = math.rsqrt %46 : vector<2x1x32xf32>
    %48 = vector.broadcast %47 : vector<2x1x32xf32> to vector<2x8x32xf32>
    %49 = arith.mulf %44, %48 : vector<2x8x32xf32>
    %50 = vector.shape_cast %49 : vector<2x8x32xf32> to vector<16x32xf32>
    %51 = tpu.iota {dimensions = array<i32: 0>} : vector<8x8xi32>
    %52 = tpu.iota {dimensions = array<i32: 1>} : vector<8x8xi32>
    %53 = arith.cmpi eq, %51, %52 : vector<8x8xi32>
    %54 = arith.extui %53 : vector<8x8xi1> to vector<8x8xi32>
    %55 = arith.sitofp %54 : vector<8x8xi32> to vector<8x8xf32>
    %56 = vector.extract_strided_slice %28 {offsets = [8, 0], sizes = [8, 32], strides = [1, 1]} : vector<16x32xf32> to vector<8x32xf32>
    %57 = vector.extract_strided_slice %50 {offsets = [0, 0], sizes = [8, 32], strides = [1, 1]} : vector<16x32xf32> to vector<8x32xf32>
    %58 = tpu.concatenate %56, %57 in 0 : vector<8x32xf32>, vector<8x32xf32> -> vector<16x32xf32>
    %59 = vector.shape_cast %58 : vector<16x32xf32> to vector<2x8x32xf32>
    %60 = arith.mulf %59, %59 : vector<2x8x32xf32>
    %cst_21 = arith.constant dense<0.000000e+00> : vector<2x32xf32>
    %61 = vector.multi_reduction <add>, %60, %cst_21 [1] : vector<2x8x32xf32> to vector<2x32xf32>
    %62 = vector.shape_cast %61 : vector<2x32xf32> to vector<2x1x32xf32>
    %cst_22 = arith.constant 1.000000e-24 : f32
    %63 = vector.broadcast %cst_22 : f32 to vector<2x1x32xf32>
    %64 = arith.maximumf %62, %63 : vector<2x1x32xf32>
    %65 = math.rsqrt %64 : vector<2x1x32xf32>
    %66 = vector.broadcast %65 : vector<2x1x32xf32> to vector<2x8x32xf32>
    %67 = arith.mulf %59, %66 : vector<2x8x32xf32>
    %68 = vector.shape_cast %67 : vector<2x8x32xf32> to vector<16x32xf32>
    %cst_23 = arith.constant dense<0.000000e+00> : vector<16xf32>
    %69 = vector.multi_reduction <add>, %68, %cst_23 [1] : vector<16x32xf32> to vector<16xf32>
    %70 = vector.shape_cast %69 : vector<16xf32> to vector<16x1xf32>
    %cst_24 = arith.constant 3.200000e+01 : f32
    %71 = vector.broadcast %cst_24 : f32 to vector<16x1xf32>
    %72 = arith.divf %70, %71 : vector<16x1xf32>
    %73 = vector.broadcast %72 : vector<16x1xf32> to vector<16x32xf32>
    %74 = arith.subf %68, %73 : vector<16x32xf32>
    %cst_25 = arith.constant dense<0.000000e+00> : vector<16x16xf32>
    %75 = tpu.matmul %68, %74, %cst_25 {dimension_numbers = #tpu.dot_dimension_numbers<[1], [1], [0], [0], [0, 0, 1, 0], [], []>} : vector<16x32xf32>, vector<16x32xf32>, vector<16x16xf32> -> vector<16x16xf32>
    %cst_26 = arith.constant 3.125000e-02 : f32
    %76 = vector.broadcast %cst_26 : f32 to vector<16x16xf32>
    %77 = arith.mulf %76, %75 : vector<16x16xf32>
    %78 = vector.extract_strided_slice %77 {offsets = [0, 0], sizes = [8, 8], strides = [1, 1]} : vector<16x16xf32> to vector<8x8xf32>
    %79 = vector.extract_strided_slice %77 {offsets = [0, 8], sizes = [8, 8], strides = [1, 1]} : vector<16x16xf32> to vector<8x8xf32>
    %80 = vector.extract_strided_slice %77 {offsets = [8, 8], sizes = [8, 8], strides = [1, 1]} : vector<16x16xf32> to vector<8x8xf32>
    %cst_27 = arith.constant dense<0.000000e+00> : vector<8x8xf32>
    %81 = tpu.matmul %79, %79, %cst_27 {dimension_numbers = #tpu.dot_dimension_numbers<[1], [0], [0], [1], [0, 0, 1, 1], [], []>} : vector<8x8xf32>, vector<8x8xf32>, vector<8x8xf32> -> vector<8x8xf32>
    %82 = tpu.transpose %79, [1, 0] : vector<8x8xf32> -> vector<8x8xf32>
    %83 = arith.mulf %55, %79 : vector<8x8xf32>
    %84 = vector.shape_cast %83 : vector<8x8xf32> to vector<1x8x8xf32>
    %cst_28 = arith.constant dense<0.000000e+00> : vector<1xf32>
    %85 = vector.multi_reduction <add>, %84, %cst_28 [1, 2] : vector<1x8x8xf32> to vector<1xf32>
    %86 = vector.shape_cast %85 : vector<1xf32> to vector<1x1x1xf32>
    %87 = vector.extract %86[0, 0, 0] : f32 from vector<1x1x1xf32>
    %88 = arith.mulf %55, %81 : vector<8x8xf32>
    %89 = vector.shape_cast %88 : vector<8x8xf32> to vector<1x8x8xf32>
    %cst_29 = arith.constant dense<0.000000e+00> : vector<1xf32>
    %90 = vector.multi_reduction <add>, %89, %cst_29 [1, 2] : vector<1x8x8xf32> to vector<1xf32>
    %91 = vector.shape_cast %90 : vector<1xf32> to vector<1x1x1xf32>
    %92 = vector.extract %91[0, 0, 0] : f32 from vector<1x1x1xf32>
    %93 = arith.mulf %81, %82 : vector<8x8xf32>
    %94 = vector.shape_cast %93 : vector<8x8xf32> to vector<1x8x8xf32>
    %cst_30 = arith.constant dense<0.000000e+00> : vector<1xf32>
    %95 = vector.multi_reduction <add>, %94, %cst_30 [1, 2] : vector<1x8x8xf32> to vector<1xf32>
    %96 = vector.shape_cast %95 : vector<1xf32> to vector<1x1x1xf32>
    %97 = vector.extract %96[0, 0, 0] : f32 from vector<1x1x1xf32>
    %98 = tpu.transpose %81, [1, 0] : vector<8x8xf32> -> vector<8x8xf32>
    %99 = arith.mulf %81, %98 : vector<8x8xf32>
    %100 = vector.shape_cast %99 : vector<8x8xf32> to vector<1x8x8xf32>
    %cst_31 = arith.constant dense<0.000000e+00> : vector<1xf32>
    %101 = vector.multi_reduction <add>, %100, %cst_31 [1, 2] : vector<1x8x8xf32> to vector<1xf32>
    %102 = vector.shape_cast %101 : vector<1xf32> to vector<1x1x1xf32>
    %103 = vector.extract %102[0, 0, 0] : f32 from vector<1x1x1xf32>
    %cst_32 = arith.constant 5.000000e-01 : f32
    %104 = arith.mulf %cst_32, %92 : f32
    %105 = arith.subf %87, %104 : f32
    %cst_33 = arith.constant 0.333333343 : f32
    %106 = arith.mulf %cst_33, %97 : f32
    %107 = arith.addf %105, %106 : f32
    %cst_34 = arith.constant 2.500000e-01 : f32
    %108 = arith.mulf %cst_34, %103 : f32
    %109 = arith.subf %107, %108 : f32
    %cst_35 = arith.constant -1.000000e+00 : f32
    %110 = arith.mulf %cst_35, %109 : f32
    %cst_36 = arith.constant dense<0.000000e+00> : vector<8x8xf32>
    %111 = tpu.matmul %80, %80, %cst_36 {dimension_numbers = #tpu.dot_dimension_numbers<[1], [0], [0], [1], [0, 0, 1, 1], [], []>} : vector<8x8xf32>, vector<8x8xf32>, vector<8x8xf32> -> vector<8x8xf32>
    %cst_37 = arith.constant dense<0.000000e+00> : vector<8x8xf32>
    %112 = tpu.matmul %111, %80, %cst_37 {dimension_numbers = #tpu.dot_dimension_numbers<[1], [0], [0], [1], [0, 0, 1, 1], [], []>} : vector<8x8xf32>, vector<8x8xf32>, vector<8x8xf32> -> vector<8x8xf32>
    %cst_38 = arith.constant dense<0.000000e+00> : vector<8x8xf32>
    %113 = tpu.matmul %111, %111, %cst_38 {dimension_numbers = #tpu.dot_dimension_numbers<[1], [0], [0], [1], [0, 0, 1, 1], [], []>} : vector<8x8xf32>, vector<8x8xf32>, vector<8x8xf32> -> vector<8x8xf32>
    %cst_39 = arith.constant 5.000000e-01 : f32
    %114 = vector.broadcast %cst_39 : f32 to vector<8x8xf32>
    %115 = arith.mulf %114, %111 : vector<8x8xf32>
    %116 = arith.subf %80, %115 : vector<8x8xf32>
    %cst_40 = arith.constant 0.333333343 : f32
    %117 = vector.broadcast %cst_40 : f32 to vector<8x8xf32>
    %118 = arith.mulf %117, %112 : vector<8x8xf32>
    %119 = arith.addf %116, %118 : vector<8x8xf32>
    %cst_41 = arith.constant 2.500000e-01 : f32
    %120 = vector.broadcast %cst_41 : f32 to vector<8x8xf32>
    %121 = arith.mulf %120, %113 : vector<8x8xf32>
    %122 = arith.subf %119, %121 : vector<8x8xf32>
    %123 = arith.mulf %78, %122 : vector<8x8xf32>
    %124 = vector.shape_cast %123 : vector<8x8xf32> to vector<1x8x8xf32>
    %cst_42 = arith.constant dense<0.000000e+00> : vector<1xf32>
    %125 = vector.multi_reduction <add>, %124, %cst_42 [1, 2] : vector<1x8x8xf32> to vector<1xf32>
    %126 = vector.shape_cast %125 : vector<1xf32> to vector<1x1x1xf32>
    %127 = vector.extract %126[0, 0, 0] : f32 from vector<1x1x1xf32>
    %cst_43 = arith.constant 0.000000e+00 : f32
    %128 = arith.subf %cst_43, %127 : f32
    %129 = arith.mulf %55, %122 : vector<8x8xf32>
    %130 = vector.shape_cast %129 : vector<8x8xf32> to vector<1x8x8xf32>
    %cst_44 = arith.constant dense<0.000000e+00> : vector<1xf32>
    %131 = vector.multi_reduction <add>, %130, %cst_44 [1, 2] : vector<1x8x8xf32> to vector<1xf32>
    %132 = vector.shape_cast %131 : vector<1xf32> to vector<1x1x1xf32>
    %133 = vector.extract %132[0, 0, 0] : f32 from vector<1x1x1xf32>
    %cst_45 = arith.constant 1.000000e+00 : f32
    %134 = arith.mulf %cst_45, %133 : f32
    %135 = arith.subf %128, %134 : f32
    %136 = vector.extract_strided_slice %28 {offsets = [0, 0], sizes = [8, 32], strides = [1, 1]} : vector<16x32xf32> to vector<8x32xf32>
    %137 = vector.extract_strided_slice %50 {offsets = [8, 0], sizes = [8, 32], strides = [1, 1]} : vector<16x32xf32> to vector<8x32xf32>
    %138 = tpu.concatenate %136, %137 in 0 : vector<8x32xf32>, vector<8x32xf32> -> vector<16x32xf32>
    %139 = vector.shape_cast %138 : vector<16x32xf32> to vector<2x8x32xf32>
    %140 = arith.mulf %139, %139 : vector<2x8x32xf32>
    %cst_46 = arith.constant dense<0.000000e+00> : vector<2x32xf32>
    %141 = vector.multi_reduction <add>, %140, %cst_46 [1] : vector<2x8x32xf32> to vector<2x32xf32>
    %142 = vector.shape_cast %141 : vector<2x32xf32> to vector<2x1x32xf32>
    %cst_47 = arith.constant 1.000000e-24 : f32
    %143 = vector.broadcast %cst_47 : f32 to vector<2x1x32xf32>
    %144 = arith.maximumf %142, %143 : vector<2x1x32xf32>
    %145 = math.rsqrt %144 : vector<2x1x32xf32>
    %146 = vector.broadcast %145 : vector<2x1x32xf32> to vector<2x8x32xf32>
    %147 = arith.mulf %139, %146 : vector<2x8x32xf32>
    %148 = vector.shape_cast %147 : vector<2x8x32xf32> to vector<16x32xf32>
    %cst_48 = arith.constant dense<0.000000e+00> : vector<16xf32>
    %149 = vector.multi_reduction <add>, %148, %cst_48 [1] : vector<16x32xf32> to vector<16xf32>
    %150 = vector.shape_cast %149 : vector<16xf32> to vector<16x1xf32>
    %cst_49 = arith.constant 3.200000e+01 : f32
    %151 = vector.broadcast %cst_49 : f32 to vector<16x1xf32>
    %152 = arith.divf %150, %151 : vector<16x1xf32>
    %153 = vector.broadcast %152 : vector<16x1xf32> to vector<16x32xf32>
    %154 = arith.subf %148, %153 : vector<16x32xf32>
    %cst_50 = arith.constant dense<0.000000e+00> : vector<16x16xf32>
    %155 = tpu.matmul %148, %154, %cst_50 {dimension_numbers = #tpu.dot_dimension_numbers<[1], [1], [0], [0], [0, 0, 1, 0], [], []>} : vector<16x32xf32>, vector<16x32xf32>, vector<16x16xf32> -> vector<16x16xf32>
    %cst_51 = arith.constant 3.125000e-02 : f32
    %156 = vector.broadcast %cst_51 : f32 to vector<16x16xf32>
    %157 = arith.mulf %156, %155 : vector<16x16xf32>
    %158 = vector.extract_strided_slice %157 {offsets = [0, 0], sizes = [8, 8], strides = [1, 1]} : vector<16x16xf32> to vector<8x8xf32>
    %159 = vector.extract_strided_slice %157 {offsets = [0, 8], sizes = [8, 8], strides = [1, 1]} : vector<16x16xf32> to vector<8x8xf32>
    %160 = vector.extract_strided_slice %157 {offsets = [8, 8], sizes = [8, 8], strides = [1, 1]} : vector<16x16xf32> to vector<8x8xf32>
    %cst_52 = arith.constant dense<0.000000e+00> : vector<8x8xf32>
    %161 = tpu.matmul %159, %159, %cst_52 {dimension_numbers = #tpu.dot_dimension_numbers<[1], [0], [0], [1], [0, 0, 1, 1], [], []>} : vector<8x8xf32>, vector<8x8xf32>, vector<8x8xf32> -> vector<8x8xf32>
    %162 = tpu.transpose %159, [1, 0] : vector<8x8xf32> -> vector<8x8xf32>
    %163 = arith.mulf %55, %159 : vector<8x8xf32>
    %164 = vector.shape_cast %163 : vector<8x8xf32> to vector<1x8x8xf32>
    %cst_53 = arith.constant dense<0.000000e+00> : vector<1xf32>
    %165 = vector.multi_reduction <add>, %164, %cst_53 [1, 2] : vector<1x8x8xf32> to vector<1xf32>
    %166 = vector.shape_cast %165 : vector<1xf32> to vector<1x1x1xf32>
    %167 = vector.extract %166[0, 0, 0] : f32 from vector<1x1x1xf32>
    %168 = arith.mulf %55, %161 : vector<8x8xf32>
    %169 = vector.shape_cast %168 : vector<8x8xf32> to vector<1x8x8xf32>
    %cst_54 = arith.constant dense<0.000000e+00> : vector<1xf32>
    %170 = vector.multi_reduction <add>, %169, %cst_54 [1, 2] : vector<1x8x8xf32> to vector<1xf32>
    %171 = vector.shape_cast %170 : vector<1xf32> to vector<1x1x1xf32>
    %172 = vector.extract %171[0, 0, 0] : f32 from vector<1x1x1xf32>
    %173 = arith.mulf %161, %162 : vector<8x8xf32>
    %174 = vector.shape_cast %173 : vector<8x8xf32> to vector<1x8x8xf32>
    %cst_55 = arith.constant dense<0.000000e+00> : vector<1xf32>
    %175 = vector.multi_reduction <add>, %174, %cst_55 [1, 2] : vector<1x8x8xf32> to vector<1xf32>
    %176 = vector.shape_cast %175 : vector<1xf32> to vector<1x1x1xf32>
    %177 = vector.extract %176[0, 0, 0] : f32 from vector<1x1x1xf32>
    %178 = tpu.transpose %161, [1, 0] : vector<8x8xf32> -> vector<8x8xf32>
    %179 = arith.mulf %161, %178 : vector<8x8xf32>
    %180 = vector.shape_cast %179 : vector<8x8xf32> to vector<1x8x8xf32>
    %cst_56 = arith.constant dense<0.000000e+00> : vector<1xf32>
    %181 = vector.multi_reduction <add>, %180, %cst_56 [1, 2] : vector<1x8x8xf32> to vector<1xf32>
    %182 = vector.shape_cast %181 : vector<1xf32> to vector<1x1x1xf32>
    %183 = vector.extract %182[0, 0, 0] : f32 from vector<1x1x1xf32>
    %cst_57 = arith.constant 5.000000e-01 : f32
    %184 = arith.mulf %cst_57, %172 : f32
    %185 = arith.subf %167, %184 : f32
    %cst_58 = arith.constant 0.333333343 : f32
    %186 = arith.mulf %cst_58, %177 : f32
    %187 = arith.addf %185, %186 : f32
    %cst_59 = arith.constant 2.500000e-01 : f32
    %188 = arith.mulf %cst_59, %183 : f32
    %189 = arith.subf %187, %188 : f32
    %cst_60 = arith.constant -1.000000e+00 : f32
    %190 = arith.mulf %cst_60, %189 : f32
    %cst_61 = arith.constant dense<0.000000e+00> : vector<8x8xf32>
    %191 = tpu.matmul %160, %160, %cst_61 {dimension_numbers = #tpu.dot_dimension_numbers<[1], [0], [0], [1], [0, 0, 1, 1], [], []>} : vector<8x8xf32>, vector<8x8xf32>, vector<8x8xf32> -> vector<8x8xf32>
    %cst_62 = arith.constant dense<0.000000e+00> : vector<8x8xf32>
    %192 = tpu.matmul %191, %160, %cst_62 {dimension_numbers = #tpu.dot_dimension_numbers<[1], [0], [0], [1], [0, 0, 1, 1], [], []>} : vector<8x8xf32>, vector<8x8xf32>, vector<8x8xf32> -> vector<8x8xf32>
    %cst_63 = arith.constant dense<0.000000e+00> : vector<8x8xf32>
    %193 = tpu.matmul %191, %191, %cst_63 {dimension_numbers = #tpu.dot_dimension_numbers<[1], [0], [0], [1], [0, 0, 1, 1], [], []>} : vector<8x8xf32>, vector<8x8xf32>, vector<8x8xf32> -> vector<8x8xf32>
    %cst_64 = arith.constant 5.000000e-01 : f32
    %194 = vector.broadcast %cst_64 : f32 to vector<8x8xf32>
    %195 = arith.mulf %194, %191 : vector<8x8xf32>
    %196 = arith.subf %160, %195 : vector<8x8xf32>
    %cst_65 = arith.constant 0.333333343 : f32
    %197 = vector.broadcast %cst_65 : f32 to vector<8x8xf32>
    %198 = arith.mulf %197, %192 : vector<8x8xf32>
    %199 = arith.addf %196, %198 : vector<8x8xf32>
    %cst_66 = arith.constant 2.500000e-01 : f32
    %200 = vector.broadcast %cst_66 : f32 to vector<8x8xf32>
    %201 = arith.mulf %200, %193 : vector<8x8xf32>
    %202 = arith.subf %199, %201 : vector<8x8xf32>
    %203 = arith.mulf %158, %202 : vector<8x8xf32>
    %204 = vector.shape_cast %203 : vector<8x8xf32> to vector<1x8x8xf32>
    %cst_67 = arith.constant dense<0.000000e+00> : vector<1xf32>
    %205 = vector.multi_reduction <add>, %204, %cst_67 [1, 2] : vector<1x8x8xf32> to vector<1xf32>
    %206 = vector.shape_cast %205 : vector<1xf32> to vector<1x1x1xf32>
    %207 = vector.extract %206[0, 0, 0] : f32 from vector<1x1x1xf32>
    %cst_68 = arith.constant 0.000000e+00 : f32
    %208 = arith.subf %cst_68, %207 : f32
    %209 = arith.mulf %55, %202 : vector<8x8xf32>
    %210 = vector.shape_cast %209 : vector<8x8xf32> to vector<1x8x8xf32>
    %cst_69 = arith.constant dense<0.000000e+00> : vector<1xf32>
    %211 = vector.multi_reduction <add>, %210, %cst_69 [1, 2] : vector<1x8x8xf32> to vector<1xf32>
    %212 = vector.shape_cast %211 : vector<1xf32> to vector<1x1x1xf32>
    %213 = vector.extract %212[0, 0, 0] : f32 from vector<1x1x1xf32>
    %cst_70 = arith.constant 1.000000e+00 : f32
    %214 = arith.mulf %cst_70, %213 : f32
    %215 = arith.subf %208, %214 : f32
    %216 = arith.addf %110, %190 : f32
    %217 = arith.addf %135, %215 : f32
    %cst_71 = arith.constant 1.000000e+00 : f32
    %218 = arith.mulf %cst_71, %217 : f32
    %219 = arith.addf %216, %218 : f32
    %cst_72 = arith.constant 5.000000e-01 : f32
    %220 = arith.mulf %cst_72, %219 : f32
    %c0_73 = arith.constant 0 : index
    %221 = memref.load %arg5[%c0_73] : memref<1xf32, #tpu.memory_space<smem>>
    memref.store %220, %arg5[%c0_73] : memref<1xf32, #tpu.memory_space<smem>>
    return
  }
}

</mosaic_0001>

<llo_original>
// kernel: matrixssl_forward.1
$region0: #{matrixssl_forward.1}
  #allocation0 [shape = 'u32[]', space=smem, size = 0x4, offset = 0x4, fixed_abs, tag = 'smem constant byte address 0x4 - core index']
  #allocation1 [shape = 'u32[144,128]{1,0:T(1,128)}', space=vmem, size = 0x12000, scoped, tag = 'internal scratch']
  %s0 = inlined_call_operand.hbm [shape: f32[8,16], index: 0, kind: input, shape index: {}]
  %s1 = inlined_call_operand.hbm [shape: f32[8,16], index: 1, kind: input, shape index: {}]
  %s2 = inlined_call_operand.hbm [shape: f32[16,32], index: 2, kind: input, shape index: {}]
  %s3 = inlined_call_operand.hbm [shape: f32[32,64], index: 3, kind: input, shape index: {}]
  %s4 = inlined_call_operand.hbm [shape: f32[32,32], index: 4, kind: input, shape index: {}]
  %s5 = inlined_call_operand.hbm [shape: f32[1], index: 5, kind: output, shape index: {}]
  %s6 = sld [smem:[#allocation0]]
  $region50: #{matrixssl_forward.1} parent=0
    _
  %s8 = ssub.s32 1, %s6
  %s9 = scalar_select 0, %s8, %s6
  $region1: #{matrixssl_forward.1} parent=0
    #allocation2 [shape = 'u8[4096]{0}', space=vmem, size = 0x1000, scoped, tag = 'input window, operand 0, single buffered']
    #allocation3 [shape = 's32[1]{0}', space=sflag, size = 0x4, scoped, tag = 'scoped memory for matrixssl_forward.1']
    #allocation4 [shape = 's32[1]{0}', space=sflag, size = 0x4, scoped, tag = 'scoped memory for matrixssl_forward.1']
    #allocation5 [shape = 'u8[4096]{0}', space=vmem, size = 0x1000, scoped, tag = 'input window, operand 1, single buffered']
    #allocation6 [shape = 's32[1]{0}', space=sflag, size = 0x4, scoped, tag = 'scoped memory for matrixssl_forward.1']
    #allocation7 [shape = 'u8[8192]{0}', space=vmem, size = 0x2000, scoped, tag = 'input window, operand 2, single buffered']
    #allocation8 [shape = 'u8[16384]{0}', space=vmem, size = 0x4000, scoped, tag = 'input window, operand 3, single buffered']
    #allocation9 [shape = 's32[1]{0}', space=sflag, size = 0x4, scoped, tag = 'scoped memory for matrixssl_forward.1']
    #allocation10 [shape = 'u8[16384]{0}', space=vmem, size = 0x4000, scoped, tag = 'input window, operand 4, single buffered']
    #allocation11 [shape = 'u8[512]{0}', space=smem, size = 0x200, scoped, tag = 'output window, operand 0, single buffered']
    %10 = vsyncpa [#allocation3], 0
    %11 = vsyncpa [#allocation6], 0
    %12 = vsyncpa [#allocation9], 0
    %13 = vsyncpa [#allocation4], 0
    // Predicated region
    $region2: #{matrixssl_forward.1} parent=1 // pred_check
      _
    $region3: #{matrixssl_forward.1} parent=1 // pred_check_branch
      %15 = sbr.rel (0) target = $region5
    $region4: #{matrixssl_forward.1} parent=1 // pred_region
      %s17 = ssub.s32 128, 128
      %18 = vsyncadd [#allocation3], %s17
      %s20 = sshll.u32 [#allocation2], 4
      %s21 = int_to_ptr.vmem [resolvable:$true] %s20
      %23 = dma.hbm_to_vmem [thread:$0]  %s0, 128, %s21, [#allocation3]
    $region5: #{matrixssl_forward.1} parent=1 // pred_fallthru
      _
    // Predicated region
    $region6: #{matrixssl_forward.1} parent=1 // pred_check
      _
    $region7: #{matrixssl_forward.1} parent=1 // pred_check_branch
      %25 = sbr.rel (0) target = $region9
    $region8: #{matrixssl_forward.1} parent=1 // pred_region
      %s27 = ssub.s32 128, 128
      %28 = vsyncadd [#allocation6], %s27
      %s30 = sshll.u32 [#allocation5], 4
      %s31 = int_to_ptr.vmem [resolvable:$true] %s30
      %33 = dma.hbm_to_vmem [thread:$0]  %s1, 128, %s31, [#allocation6]
    $region9: #{matrixssl_forward.1} parent=1 // pred_fallthru
      _
    // Predicated region
    $region10: #{matrixssl_forward.1} parent=1 // pred_check
      _
    $region11: #{matrixssl_forward.1} parent=1 // pred_check_branch
      %35 = sbr.rel (0) target = $region13
    $region12: #{matrixssl_forward.1} parent=1 // pred_region
      %s37 = ssub.s32 256, 256
      %38 = vsyncadd [#allocation6], %s37
      %s39 = sshll.u32 [#allocation7], 4
      %s40 = int_to_ptr.vmem [resolvable:$true] %s39
      %45 = dma.hbm_to_vmem [thread:$0]  %s2, 256, %s40, [#allocation6], 128, 128, 8
    $region13: #{matrixssl_forward.1} parent=1 // pred_fallthru
      _
    // Predicated region
    $region14: #{matrixssl_forward.1} parent=1 // pred_check
      _
    $region15: #{matrixssl_forward.1} parent=1 // pred_check_branch
      %47 = sbr.rel (0) target = $region17
    $region16: #{matrixssl_forward.1} parent=1 // pred_region
      %s49 = ssub.s32 512, 512
      %50 = vsyncadd [#allocation9], %s49
      %s51 = sshll.u32 [#allocation8], 4
      %s52 = int_to_ptr.vmem [resolvable:$true] %s51
      %57 = dma.hbm_to_vmem [thread:$0]  %s3, 512, %s52, [#allocation9], 128, 128, 8
    $region17: #{matrixssl_forward.1} parent=1 // pred_fallthru
      _
    // Predicated region
    $region18: #{matrixssl_forward.1} parent=1 // pred_check
      _
    $region19: #{matrixssl_forward.1} parent=1 // pred_check_branch
      %59 = sbr.rel (0) target = $region21
    $region20: #{matrixssl_forward.1} parent=1 // pred_region
      %s61 = ssub.s32 512, 512
      %62 = vsyncadd [#allocation9], %s61
      %s63 = sshll.u32 [#allocation10], 4
      %s64 = int_to_ptr.vmem [resolvable:$true] %s63
      %69 = dma.hbm_to_vmem [thread:$0]  %s4, 512, %s64, [#allocation9], 128, 128, 8
    $region21: #{matrixssl_forward.1} parent=1 // pred_fallthru
      _
    // Predicated region
    $region22: #{matrixssl_forward.1} parent=1 // pred_check
      _
    $region23: #{matrixssl_forward.1} parent=1 // pred_check_branch
      %71 = sbr.rel (0) target = $region25
    $region24: #{matrixssl_forward.1} parent=1 // pred_region
      %72 = dma.done [#allocation3], 128
    $region25: #{matrixssl_forward.1} parent=1 // pred_fallthru
      _
    // Predicated region
    $region26: #{matrixssl_forward.1} parent=1 // pred_check
      _
    $region27: #{matrixssl_forward.1} parent=1 // pred_check_branch
      %74 = sbr.rel (0) target = $region29
    $region28: #{matrixssl_forward.1} parent=1 // pred_region
      %75 = dma.done [#allocation6], 128
    $region29: #{matrixssl_forward.1} parent=1 // pred_fallthru
      _
    // Predicated region
    $region30: #{matrixssl_forward.1} parent=1 // pred_check
      _
    $region31: #{matrixssl_forward.1} parent=1 // pred_check_branch
      %77 = sbr.rel (0) target = $region33
    $region32: #{matrixssl_forward.1} parent=1 // pred_region
      %78 = dma.done [#allocation6], 256
    $region33: #{matrixssl_forward.1} parent=1 // pred_fallthru
      _
    // Predicated region
    $region34: #{matrixssl_forward.1} parent=1 // pred_check
      _
    $region35: #{matrixssl_forward.1} parent=1 // pred_check_branch
      %80 = sbr.rel (0) target = $region37
    $region36: #{matrixssl_forward.1} parent=1 // pred_region
      %81 = dma.done [#allocation9], 512
    $region37: #{matrixssl_forward.1} parent=1 // pred_fallthru
      _
    // Predicated region
    $region38: #{matrixssl_forward.1} parent=1 // pred_check
      _
    $region39: #{matrixssl_forward.1} parent=1 // pred_check_branch
      %83 = sbr.rel (0) target = $region41
    $region40: #{matrixssl_forward.1} parent=1 // pred_region
      %84 = dma.done [#allocation9], 512
    $region41: #{matrixssl_forward.1} parent=1 // pred_fallthru
      _
    %v85 = vld [vmem:[#allocation2] sm:$0xff]
    %v86 = vld [vmem:[#allocation5] sm:$0xff]
    %v87 = vld [vmem:[#allocation7] sm:$0xff]
    %v88 = vld [vmem:[#allocation7 + $0x8] sm:$0xff]
    %vm89 = vcmask 130048
    %v91 = vsel %vm89, %v85, 0
    %v94 = vsel %vm89, %v86, 0
    %96 = vmatprep.subr.mxu0 0.0
    %97 = vmatpush1.msra.mxu0 %v87
    %98 = vmatprep.subr.mxu0 0.0
    %99 = vmatpush1.msra.mxu0 %v88
    %100 = vmatprep.subr.mxu0 0.0
    %101 = vmatpush1.msra.mxu0 0.0
    %102 = vmatprep.subr.mxu0 0.0
    %103 = vmatpush1.msra.mxu0 0.0
    %104 = vmatprep.subr.mxu0 0.0
    %105 = vmatpush1.msra.mxu0 0.0
    %106 = vmatprep.subr.mxu0 0.0
    %107 = vmatpush1.msra.mxu0 0.0
    %108 = vmatprep.subr.mxu0 0.0
    %109 = vmatpush1.msra.mxu0 0.0
    %110 = vmatprep.subr.mxu0 0.0
    %111 = vmatpush1.msra.mxu0 0.0
    %112 = vmatprep.subr.mxu0 0.0
    %113 = vmatpush1.msra.mxu0 0.0
    %114 = vmatprep.subr.mxu0 0.0
    %115 = vmatpush1.msra.mxu0 0.0
    %116 = vmatprep.subr.mxu0 0.0
    %117 = vmatpush1.msra.mxu0 0.0
    %118 = vmatprep.subr.mxu0 0.0
    %119 = vmatpush1.msra.mxu0 0.0
    %120 = vmatprep.subr.mxu0 0.0
    %121 = vmatpush1.msra.mxu0 0.0
    %122 = vmatprep.subr.mxu0 0.0
    %123 = vmatpush1.msra.mxu0 0.0
    %124 = vmatprep.subr.mxu0 0.0
    %125 = vmatpush1.msra.mxu0 0.0
    %126 = vmatprep.subr.mxu0 0.0
    %127 = vmatpush1.msra.mxu0 0.0
    %128 = vmatprep.subr.mxu0 0.0
    %129 = vmatpush1.msra.mxu0 0.0
    %130 = vmatprep.subr.mxu0 0.0
    %131 = vmatpush1.msra.mxu0 0.0
    %132 = vmatprep.subr.mxu0 0.0
    %133 = vmatpush1.msra.mxu0 0.0
    %134 = vmatprep.subr.mxu0 0.0
    %135 = vmatpush1.msra.mxu0 0.0
    %136 = vmatprep.subr.mxu0 0.0
    %137 = vmatpush1.msra.mxu0 0.0
    %138 = vmatprep.subr.mxu0 0.0
    %139 = vmatpush1.msra.mxu0 0.0
    %140 = vmatprep.subr.mxu0 0.0
    %141 = vmatpush1.msra.mxu0 0.0
    %142 = vmatprep.subr.mxu0 0.0
    %143 = vmatpush1.msra.mxu0 0.0
    %144 = vmatprep.subr.mxu0 0.0
    %145 = vmatpush1.msra.mxu0 0.0
    %146 = vmatprep.subr.mxu0 0.0
    %147 = vmatpush1.msra.mxu0 0.0
    %148 = vmatprep.subr.mxu0 0.0
    %149 = vmatpush1.msra.mxu0 0.0
    %150 = vmatprep.subr.mxu0 0.0
    %151 = vmatpush1.msra.mxu0 0.0
    %152 = vmatprep.subr.mxu0 0.0
    %153 = vmatpush1.msra.mxu0 0.0
    %154 = vmatprep.subr.mxu0 0.0
    %155 = vmatpush1.msra.mxu0 0.0
    %156 = vmatprep.subr.mxu0 0.0
    %157 = vmatpush1.msra.mxu0 0.0
    %158 = vmatprep.subr.mxu0 0.0
    %159 = vmatpush1.msra.mxu0 0.0
    %160 = vmatprep.mubr.f32.mxu0 0.0
    %161 = vmatmul.mubr.f32.gmra.mrb[0].mxu0 %v91
    %v162 = vpop.f32.mrb[0].mxu0
    %v163 = vadd.f32 0.0, %v162
    %v164 = vpop.f32.mrb[0].mxu0
    %165 = vmatprep.mubr.f32.mxu0 0.0
    %166 = vmatmul.mubr.f32.gmra.mrb[0].mxu0 %v94
    %v167 = vpop.f32.mrb[0].mxu0
    %v168 = vadd.f32 0.0, %v167
    %v169 = vpop.f32.mrb[0].mxu0
    %170 = vdwg.mxu0
    %v171 = vld [vmem:[#allocation8] sm:$0xff]
    %v172 = vld [vmem:[#allocation8 + $0x8] sm:$0xff]
    %v173 = vld [vmem:[#allocation8 + $0x10] sm:$0xff]
    %v174 = vld [vmem:[#allocation8 + $0x18] sm:$0xff]
    %vm175 = vcmask 261120
    %v177 = vsel %vm175, %v163, 0
    %v180 = vsel %vm175, %v168, 0
    %182 = vmatprep.subr.mxu0 0.0
    %183 = vmatpush1.msra.mxu0 %v171
    %184 = vmatprep.subr.mxu0 0.0
    %185 = vmatpush1.msra.mxu0 %v172
    %186 = vmatprep.subr.mxu0 0.0
    %187 = vmatpush1.msra.mxu0 %v173
    %188 = vmatprep.subr.mxu0 0.0
    %189 = vmatpush1.msra.mxu0 %v174
    %190 = vmatprep.subr.mxu0 0.0
    %191 = vmatpush1.msra.mxu0 0.0
    %192 = vmatprep.subr.mxu0 0.0
    %193 = vmatpush1.msra.mxu0 0.0
    %194 = vmatprep.subr.mxu0 0.0
    %195 = vmatpush1.msra.mxu0 0.0
    %196 = vmatprep.subr.mxu0 0.0
    %197 = vmatpush1.msra.mxu0 0.0
    %198 = vmatprep.subr.mxu0 0.0
    %199 = vmatpush1.msra.mxu0 0.0
    %200 = vmatprep.subr.mxu0 0.0
    %201 = vmatpush1.msra.mxu0 0.0
    %202 = vmatprep.subr.mxu0 0.0
    %203 = vmatpush1.msra.mxu0 0.0
    %204 = vmatprep.subr.mxu0 0.0
    %205 = vmatpush1.msra.mxu0 0.0
    %206 = vmatprep.subr.mxu0 0.0
    %207 = vmatpush1.msra.mxu0 0.0
    %208 = vmatprep.subr.mxu0 0.0
    %209 = vmatpush1.msra.mxu0 0.0
    %210 = vmatprep.subr.mxu0 0.0
    %211 = vmatpush1.msra.mxu0 0.0
    %212 = vmatprep.subr.mxu0 0.0
    %213 = vmatpush1.msra.mxu0 0.0
    %214 = vmatprep.subr.mxu0 0.0
    %215 = vmatpush1.msra.mxu0 0.0
    %216 = vmatprep.subr.mxu0 0.0
    %217 = vmatpush1.msra.mxu0 0.0
    %218 = vmatprep.subr.mxu0 0.0
    %219 = vmatpush1.msra.mxu0 0.0
    %220 = vmatprep.subr.mxu0 0.0
    %221 = vmatpush1.msra.mxu0 0.0
    %222 = vmatprep.subr.mxu0 0.0
    %223 = vmatpush1.msra.mxu0 0.0
    %224 = vmatprep.subr.mxu0 0.0
    %225 = vmatpush1.msra.mxu0 0.0
    %226 = vmatprep.subr.mxu0 0.0
    %227 = vmatpush1.msra.mxu0 0.0
    %228 = vmatprep.subr.mxu0 0.0
    %229 = vmatpush1.msra.mxu0 0.0
    %230 = vmatprep.subr.mxu0 0.0
    %231 = vmatpush1.msra.mxu0 0.0
    %232 = vmatprep.subr.mxu0 0.0
    %233 = vmatpush1.msra.mxu0 0.0
    %234 = vmatprep.subr.mxu0 0.0
    %235 = vmatpush1.msra.mxu0 0.0
    %236 = vmatprep.subr.mxu0 0.0
    %237 = vmatpush1.msra.mxu0 0.0
    %238 = vmatprep.subr.mxu0 0.0
    %239 = vmatpush1.msra.mxu0 0.0
    %240 = vmatprep.subr.mxu0 0.0
    %241 = vmatpush1.msra.mxu0 0.0
    %242 = vmatprep.subr.mxu0 0.0
    %243 = vmatpush1.msra.mxu0 0.0
    %244 = vmatprep.subr.mxu0 0.0
    %245 = vmatpush1.msra.mxu0 0.0
    %246 = vmatprep.mubr.f32.mxu0 0.0
    %247 = vmatmul.mubr.f32.gmra.mrb[0].mxu0 %v177
    %v248 = vpop.f32.mrb[0].mxu0
    %v249 = vadd.f32 0.0, %v248
    %v250 = vpop.f32.mrb[0].mxu0
    %251 = vmatprep.mubr.f32.mxu0 0.0
    %252 = vmatmul.mubr.f32.gmra.mrb[0].mxu0 %v180
    %v253 = vpop.f32.mrb[0].mxu0
    %v254 = vadd.f32 0.0, %v253
    %v255 = vpop.f32.mrb[0].mxu0
    %256 = vdwg.mxu0
    %vm257 = vcmask 523264
    %v258 = vsel %vm257, %v249, 0.0
    %v259 = vrot.slane %v258, 4
    %v260 = vadd.f32 %v258, %v259
    %v261 = vrot.slane %v260, 2
    %v262 = vadd.f32 %v260, %v261
    %v263 = vrot.slane %v262, 1
    %v264 = vadd.f32 %v262, %v263
    %v265 = vsel %vm257, %v254, 0.0
    %v266 = vrot.slane %v265, 4
    %v267 = vadd.f32 %v265, %v266
    %v268 = vrot.slane %v267, 2
    %v269 = vadd.f32 %v267, %v268
    %v270 = vrot.slane %v269, 1
    %v271 = vadd.f32 %v269, %v270
    %v272 = vmul.f32 %v249, %v249
    %v273 = vmul.f32 %v254, %v254
    %v274 = vsel %vm257, %v272, 0.0
    %v275 = vrot.slane %v274, 4
    %v276 = vadd.f32 %v274, %v275
    %v277 = vrot.slane %v276, 2
    %v278 = vadd.f32 %v276, %v277
    %v279 = vrot.slane %v278, 1
    %v280 = vadd.f32 %v278, %v279
    %v281 = vsel %vm257, %v273, 0.0
    %v282 = vrot.slane %v281, 4
    %v283 = vadd.f32 %v281, %v282
    %v284 = vrot.slane %v283, 2
    %v285 = vadd.f32 %v283, %v284
    %v286 = vrot.slane %v285, 1
    %v287 = vadd.f32 %v285, %v286
    %v288 = vmul.f32 %v264, 0.125
    %v289 = vmul.f32 %v271, 0.125
    %v290 = vmul.f32 %v280, 0.125
    %v291 = vmul.f32 %v287, 0.125
    %v292 = vmul.f32 %v288, %v288
    %v293 = vmul.f32 %v289, %v289
    %v294 = vsub.f32 %v290, %v292
    %v295 = vsub.f32 %v291, %v293
    %v296 = vsub.f32 %v249, %v288
    %v297 = vsub.f32 %v254, %v289
    %v298 = vadd.f32 %v294, 1e-05
    %v299 = vadd.f32 %v295, 1e-05
    %v300 = vrsqrt.pop %v298
    %v301 = vrsqrt.pop %v299
    %v302 = vmul.f32 %v296, %v300
    %v303 = vmul.f32 %v297, %v301
    %v304 = vld [vmem:[#allocation10] sm:$0xff]
    %v305 = vld [vmem:[#allocation10 + $0x8] sm:$0xff]
    %v306 = vld [vmem:[#allocation10 + $0x10] sm:$0xff]
    %v307 = vld [vmem:[#allocation10 + $0x18] sm:$0xff]
    %v309 = vsel %vm175, %v302, 0
    %v312 = vsel %vm175, %v303, 0
    %314 = vmatprep.subr.mxu0 0.0
    %315 = vmatpush1.msra.mxu0 %v304
    %316 = vmatprep.subr.mxu0 0.0
    %317 = vmatpush1.msra.mxu0 %v305
    %318 = vmatprep.subr.mxu0 0.0
    %319 = vmatpush1.msra.mxu0 %v306
    %320 = vmatprep.subr.mxu0 0.0
    %321 = vmatpush1.msra.mxu0 %v307
    %322 = vmatprep.subr.mxu0 0.0
    %323 = vmatpush1.msra.mxu0 0.0
    %324 = vmatprep.subr.mxu0 0.0
    %325 = vmatpush1.msra.mxu0 0.0
    %326 = vmatprep.subr.mxu0 0.0
    %327 = vmatpush1.msra.mxu0 0.0
    %328 = vmatprep.subr.mxu0 0.0
    %329 = vmatpush1.msra.mxu0 0.0
    %330 = vmatprep.subr.mxu0 0.0
    %331 = vmatpush1.msra.mxu0 0.0
    %332 = vmatprep.subr.mxu0 0.0
    %333 = vmatpush1.msra.mxu0 0.0
    %334 = vmatprep.subr.mxu0 0.0
    %335 = vmatpush1.msra.mxu0 0.0
    %336 = vmatprep.subr.mxu0 0.0
    %337 = vmatpush1.msra.mxu0 0.0
    %338 = vmatprep.subr.mxu0 0.0
    %339 = vmatpush1.msra.mxu0 0.0
    %340 = vmatprep.subr.mxu0 0.0
    %341 = vmatpush1.msra.mxu0 0.0
    %342 = vmatprep.subr.mxu0 0.0
    %343 = vmatpush1.msra.mxu0 0.0
    %344 = vmatprep.subr.mxu0 0.0
    %345 = vmatpush1.msra.mxu0 0.0
    %346 = vmatprep.subr.mxu0 0.0
    %347 = vmatpush1.msra.mxu0 0.0
    %348 = vmatprep.subr.mxu0 0.0
    %349 = vmatpush1.msra.mxu0 0.0
    %350 = vmatprep.subr.mxu0 0.0
    %351 = vmatpush1.msra.mxu0 0.0
    %352 = vmatprep.subr.mxu0 0.0
    %353 = vmatpush1.msra.mxu0 0.0
    %354 = vmatprep.subr.mxu0 0.0
    %355 = vmatpush1.msra.mxu0 0.0
    %356 = vmatprep.subr.mxu0 0.0
    %357 = vmatpush1.msra.mxu0 0.0
    %358 = vmatprep.subr.mxu0 0.0
    %359 = vmatpush1.msra.mxu0 0.0
    %360 = vmatprep.subr.mxu0 0.0
    %361 = vmatpush1.msra.mxu0 0.0
    %362 = vmatprep.subr.mxu0 0.0
    %363 = vmatpush1.msra.mxu0 0.0
    %364 = vmatprep.subr.mxu0 0.0
    %365 = vmatpush1.msra.mxu0 0.0
    %366 = vmatprep.subr.mxu0 0.0
    %367 = vmatpush1.msra.mxu0 0.0
    %368 = vmatprep.subr.mxu0 0.0
    %369 = vmatpush1.msra.mxu0 0.0
    %370 = vmatprep.subr.mxu0 0.0
    %371 = vmatpush1.msra.mxu0 0.0
    %372 = vmatprep.subr.mxu0 0.0
    %373 = vmatpush1.msra.mxu0 0.0
    %374 = vmatprep.subr.mxu0 0.0
    %375 = vmatpush1.msra.mxu0 0.0
    %376 = vmatprep.subr.mxu0 0.0
    %377 = vmatpush1.msra.mxu0 0.0
    %378 = vmatprep.mubr.f32.mxu0 0.0
    %379 = vmatmul.mubr.f32.gmra.mrb[0].mxu0 %v309
    %v380 = vpop.f32.mrb[0].mxu0
    %v381 = vadd.f32 0.0, %v380
    %v382 = vpop.f32.mrb[0].mxu0
    %383 = vmatprep.mubr.f32.mxu0 0.0
    %384 = vmatmul.mubr.f32.gmra.mrb[0].mxu0 %v312
    %v385 = vpop.f32.mrb[0].mxu0
    %v386 = vadd.f32 0.0, %v385
    %v387 = vpop.f32.mrb[0].mxu0
    %388 = vdwg.mxu0
    %v389 = vsel %vm175, %v381, 0.0
    %v390 = vrot.slane %v389, 4
    %v391 = vadd.f32 %v389, %v390
    %v392 = vrot.slane %v391, 2
    %v393 = vadd.f32 %v391, %v392
    %v394 = vrot.slane %v393, 1
    %v395 = vadd.f32 %v393, %v394
    %v396 = vsel %vm175, %v386, 0.0
    %v397 = vrot.slane %v396, 4
    %v398 = vadd.f32 %v396, %v397
    %v399 = vrot.slane %v398, 2
    %v400 = vadd.f32 %v398, %v399
    %v401 = vrot.slane %v400, 1
    %v402 = vadd.f32 %v400, %v401
    %v403 = vmul.f32 %v381, %v381
    %v404 = vmul.f32 %v386, %v386
    %v405 = vsel %vm175, %v403, 0.0
    %v406 = vrot.slane %v405, 4
    %v407 = vadd.f32 %v405, %v406
    %v408 = vrot.slane %v407, 2
    %v409 = vadd.f32 %v407, %v408
    %v410 = vrot.slane %v409, 1
    %v411 = vadd.f32 %v409, %v410
    %v412 = vsel %vm175, %v404, 0.0
    %v413 = vrot.slane %v412, 4
    %v414 = vadd.f32 %v412, %v413
    %v415 = vrot.slane %v414, 2
    %v416 = vadd.f32 %v414, %v415
    %v417 = vrot.slane %v416, 1
    %v418 = vadd.f32 %v416, %v417
    %v419 = vmul.f32 %v395, 0.125
    %v420 = vmul.f32 %v402, 0.125
    %v421 = vmul.f32 %v411, 0.125
    %v422 = vmul.f32 %v418, 0.125
    %v423 = vmul.f32 %v419, %v419
    %v424 = vmul.f32 %v420, %v420
    %v425 = vsub.f32 %v421, %v423
    %v426 = vsub.f32 %v422, %v424
    %v427 = vsub.f32 %v381, %v419
    %v428 = vsub.f32 %v386, %v420
    %v429 = vadd.f32 %v425, 1e-05
    %v430 = vadd.f32 %v426, 1e-05
    %v431 = vrsqrt.pop %v429
    %v432 = vrsqrt.pop %v430
    %v433 = vmul.f32 %v427, %v431
    %v434 = vmul.f32 %v428, %v432
    %v435 = vlaneseq
    %v436 = vshrl.u32 %v435, 7
    %v437 = vlaneseq
    %v438 = vand.u32 %v437, 127
    %vm439 = vcmp.eq.s32.totalorder %v436, %v438
    %v440 = vsel %vm439, 1, 0
    %v441 = vcvt.s32.f32 %v440
    %443 = vrot.lane.b32.xlu0 %v433, 32
    %v444 = vpop.permute.xlu0 %443
    %v446 = vmul.f32 %v303, %v303
    %v447 = vmul.f32 %v444, %v444
    %vm448 = vcmask 523520
    %v449 = vsel %vm448, %v446, 0.0
    %v450 = vrot.slane %v449, 4
    %v451 = vadd.f32 %v449, %v450
    %v452 = vrot.slane %v451, 2
    %v453 = vadd.f32 %v451, %v452
    %v454 = vrot.slane %v453, 1
    %v455 = vadd.f32 %v453, %v454
    %v456 = vsel %vm448, %v447, 0.0
    %v457 = vrot.slane %v456, 4
    %v458 = vadd.f32 %v456, %v457
    %v459 = vrot.slane %v458, 2
    %v460 = vadd.f32 %v458, %v459
    %v461 = vrot.slane %v460, 1
    %v462 = vadd.f32 %v460, %v461
    %v463 = vmax.f32 %v455, 1e-24
    %v464 = vmax.f32 %v462, 1e-24
    %v465 = vrsqrt.pop %v463
    %v466 = vrsqrt.pop %v464
    %v467 = vmul.f32 %v303, %v465
    %v468 = vmul.f32 %v444, %v466
    %471 = vrot.lane.b32.xlu0 %v467, 96
    %v472 = vpop.permute.xlu0 %471
    %473 = vrot.lane.b32.xlu0 %v468, 96
    %v474 = vpop.permute.xlu0 %473
    %v477 = vsel %vm175, %v472, 0.0
    %478 = vadd.xlane.f32.xlu0 %v477
    %v479 = vpop.xlane.xlu0 %478
    %v480 = vsel %vm175, %v474, 0.0
    %481 = vadd.xlane.f32.xlu0 %v480
    %v482 = vpop.xlane.xlu0 %481
    %v483 = vrcp.pop 32.0
    %v484 = vmul.f32 %v479, %v483
    %v485 = vmul.f32 %v482, %v483
    %v486 = vsub.f32 %v467, %v484
    %v487 = vsub.f32 %v468, %v485
    %490 = vrot.lane.b32.xlu0 %v486, 96
    %v491 = vpop.permute.xlu0 %490
    %492 = vrot.lane.b32.xlu0 %v487, 96
    %v493 = vpop.permute.xlu0 %492
    %v494 = vsel %vm175, %v472, 0
    %v496 = vsel %vm175, %v474, 0
    %v498 = vsel %vm175, %v491, 0
    %v500 = vsel %vm175, %v493, 0
    %502 = vmatprep.subr.mxu0 0.0
    %503 = vmatpush1.xpose.msra.mxu0 %v498
    %504 = vmatprep.subr.mxu0 0.0
    %505 = vmatpush1.xpose.msra.mxu0 %v500
    %506 = vmatprep.subr.mxu0 0.0
    %507 = vmatpush1.xpose.msra.mxu0 0.0
    %508 = vmatprep.subr.mxu0 0.0
    %509 = vmatpush1.xpose.msra.mxu0 0.0
    %510 = vmatprep.subr.mxu0 0.0
    %511 = vmatpush1.xpose.msra.mxu0 0.0
    %512 = vmatprep.subr.mxu0 0.0
    %513 = vmatpush1.xpose.msra.mxu0 0.0
    %514 = vmatprep.subr.mxu0 0.0
    %515 = vmatpush1.xpose.msra.mxu0 0.0
    %516 = vmatprep.subr.mxu0 0.0
    %517 = vmatpush1.xpose.msra.mxu0 0.0
    %518 = vmatprep.subr.mxu0 0.0
    %519 = vmatpush1.xpose.msra.mxu0 0.0
    %520 = vmatprep.subr.mxu0 0.0
    %521 = vmatpush1.xpose.msra.mxu0 0.0
    %522 = vmatprep.subr.mxu0 0.0
    %523 = vmatpush1.xpose.msra.mxu0 0.0
    %524 = vmatprep.subr.mxu0 0.0
    %525 = vmatpush1.xpose.msra.mxu0 0.0
    %526 = vmatprep.subr.mxu0 0.0
    %527 = vmatpush1.xpose.msra.mxu0 0.0
    %528 = vmatprep.subr.mxu0 0.0
    %529 = vmatpush1.xpose.msra.mxu0 0.0
    %530 = vmatprep.subr.mxu0 0.0
    %531 = vmatpush1.xpose.msra.mxu0 0.0
    %532 = vmatprep.subr.mxu0 0.0
    %533 = vmatpush1.xpose.msra.mxu0 0.0
    %534 = vmatprep.subr.mxu0 0.0
    %535 = vmatpush1.xpose.msra.mxu0 0.0
    %536 = vmatprep.subr.mxu0 0.0
    %537 = vmatpush1.xpose.msra.mxu0 0.0
    %538 = vmatprep.subr.mxu0 0.0
    %539 = vmatpush1.xpose.msra.mxu0 0.0
    %540 = vmatprep.subr.mxu0 0.0
    %541 = vmatpush1.xpose.msra.mxu0 0.0
    %542 = vmatprep.subr.mxu0 0.0
    %543 = vmatpush1.xpose.msra.mxu0 0.0
    %544 = vmatprep.subr.mxu0 0.0
    %545 = vmatpush1.xpose.msra.mxu0 0.0
    %546 = vmatprep.subr.mxu0 0.0
    %547 = vmatpush1.xpose.msra.mxu0 0.0
    %548 = vmatprep.subr.mxu0 0.0
    %549 = vmatpush1.xpose.msra.mxu0 0.0
    %550 = vmatprep.subr.mxu0 0.0
    %551 = vmatpush1.xpose.msra.mxu0 0.0
    %552 = vmatprep.subr.mxu0 0.0
    %553 = vmatpush1.xpose.msra.mxu0 0.0
    %554 = vmatprep.subr.mxu0 0.0
    %555 = vmatpush1.xpose.msra.mxu0 0.0
    %556 = vmatprep.subr.mxu0 0.0
    %557 = vmatpush1.xpose.msra.mxu0 0.0
    %558 = vmatprep.subr.mxu0 0.0
    %559 = vmatpush1.xpose.msra.mxu0 0.0
    %560 = vmatprep.subr.mxu0 0.0
    %561 = vmatpush1.xpose.msra.mxu0 0.0
    %562 = vmatprep.subr.mxu0 0.0
    %563 = vmatpush1.xpose.msra.mxu0 0.0
    %564 = vmatprep.subr.mxu0 0.0
    %565 = vmatpush1.xpose.msra.mxu0 0.0
    %566 = vmatprep.mubr.f32.mxu0 0.0
    %567 = vmatmul.mubr.f32.gmra.mrb[0].mxu0 %v494
    %v568 = vpop.f32.mrb[0].mxu0
    %v569 = vadd.f32 0.0, %v568
    %v570 = vpop.f32.mrb[0].mxu0
    %571 = vmatprep.mubr.f32.mxu0 0.0
    %572 = vmatmul.mubr.f32.gmra.mrb[0].mxu0 %v496
    %v573 = vpop.f32.mrb[0].mxu0
    %v574 = vadd.f32 0.0, %v573
    %v575 = vpop.f32.mrb[0].mxu0
    %576 = vdwg.mxu0
    %v577 = vmul.f32 %v569, 0.03125
    %v578 = vmul.f32 %v574, 0.03125
    %580 = vrot.lane.b32.xlu0 %v577, 120
    %v581 = vpop.permute.xlu0 %580
    %vm583 = vcmask 64512
    %v584 = vsel %vm583, %v581, 0
    %586 = vmatprep.subr.mxu0 0.0
    %587 = vmatpush1.msra.mxu0 %v581
    %588 = vmatprep.subr.mxu0 0.0
    %589 = vmatpush1.msra.mxu0 0.0
    %590 = vmatprep.subr.mxu0 0.0
    %591 = vmatpush1.msra.mxu0 0.0
    %592 = vmatprep.subr.mxu0 0.0
    %593 = vmatpush1.msra.mxu0 0.0
    %594 = vmatprep.subr.mxu0 0.0
    %595 = vmatpush1.msra.mxu0 0.0
    %596 = vmatprep.subr.mxu0 0.0
    %597 = vmatpush1.msra.mxu0 0.0
    %598 = vmatprep.subr.mxu0 0.0
    %599 = vmatpush1.msra.mxu0 0.0
    %600 = vmatprep.subr.mxu0 0.0
    %601 = vmatpush1.msra.mxu0 0.0
    %602 = vmatprep.subr.mxu0 0.0
    %603 = vmatpush1.msra.mxu0 0.0
    %604 = vmatprep.subr.mxu0 0.0
    %605 = vmatpush1.msra.mxu0 0.0
    %606 = vmatprep.subr.mxu0 0.0
    %607 = vmatpush1.msra.mxu0 0.0
    %608 = vmatprep.subr.mxu0 0.0
    %609 = vmatpush1.msra.mxu0 0.0
    %610 = vmatprep.subr.mxu0 0.0
    %611 = vmatpush1.msra.mxu0 0.0
    %612 = vmatprep.subr.mxu0 0.0
    %613 = vmatpush1.msra.mxu0 0.0
    %614 = vmatprep.subr.mxu0 0.0
    %615 = vmatpush1.msra.mxu0 0.0
    %616 = vmatprep.subr.mxu0 0.0
    %617 = vmatpush1.msra.mxu0 0.0
    %618 = vmatprep.subr.mxu0 0.0
    %619 = vmatpush1.msra.mxu0 0.0
    %620 = vmatprep.subr.mxu0 0.0
    %621 = vmatpush1.msra.mxu0 0.0
    %622 = vmatprep.subr.mxu0 0.0
    %623 = vmatpush1.msra.mxu0 0.0
    %624 = vmatprep.subr.mxu0 0.0
    %625 = vmatpush1.msra.mxu0 0.0
    %626 = vmatprep.subr.mxu0 0.0
    %627 = vmatpush1.msra.mxu0 0.0
    %628 = vmatprep.subr.mxu0 0.0
    %629 = vmatpush1.msra.mxu0 0.0
    %630 = vmatprep.subr.mxu0 0.0
    %631 = vmatpush1.msra.mxu0 0.0
    %632 = vmatprep.subr.mxu0 0.0
    %633 = vmatpush1.msra.mxu0 0.0
    %634 = vmatprep.subr.mxu0 0.0
    %635 = vmatpush1.msra.mxu0 0.0
    %636 = vmatprep.subr.mxu0 0.0
    %637 = vmatpush1.msra.mxu0 0.0
    %638 = vmatprep.subr.mxu0 0.0
    %639 = vmatpush1.msra.mxu0 0.0
    %640 = vmatprep.subr.mxu0 0.0
    %641 = vmatpush1.msra.mxu0 0.0
    %642 = vmatprep.subr.mxu0 0.0
    %643 = vmatpush1.msra.mxu0 0.0
    %644 = vmatprep.subr.mxu0 0.0
    %645 = vmatpush1.msra.mxu0 0.0
    %646 = vmatprep.subr.mxu0 0.0
    %647 = vmatpush1.msra.mxu0 0.0
    %648 = vmatprep.subr.mxu0 0.0
    %649 = vmatpush1.msra.mxu0 0.0
    %650 = vmatprep.mubr.f32.mxu0 0.0
    %651 = vmatmul.mubr.f32.gmra.mrb[0].mxu0 %v584
    %v652 = vpop.f32.mrb[0].mxu0
    %v653 = vadd.f32 0.0, %v652
    %v654 = vpop.f32.mrb[0].mxu0
    %655 = vdwg.mxu0
    %656 = vxpose.xlu0.b32.start [1/16] %v581, 128
    %657 = vxpose.xlu0.b32.cont [2/16] 0.0, 128
    %658 = vxpose.xlu0.b32.cont [3/16] 0.0, 128
    %659 = vxpose.xlu0.b32.cont [4/16] 0.0, 128
    %660 = vxpose.xlu0.b32.cont [5/16] 0.0, 128
    %661 = vxpose.xlu0.b32.cont [6/16] 0.0, 128
    %662 = vxpose.xlu0.b32.cont [7/16] 0.0, 128
    %663 = vxpose.xlu0.b32.cont [8/16] 0.0, 128
    %664 = vxpose.xlu0.b32.cont [9/16] 0.0, 128
    %665 = vxpose.xlu0.b32.cont [10/16] 0.0, 128
    %666 = vxpose.xlu0.b32.cont [11/16] 0.0, 128
    %667 = vxpose.xlu0.b32.cont [12/16] 0.0, 128
    %668 = vxpose.xlu0.b32.cont [13/16] 0.0, 128
    %669 = vxpose.xlu0.b32.cont [14/16] 0.0, 128
    %670 = vxpose.xlu0.b32.cont [15/16] 0.0, 128
    %671 = vxpose.xlu0.b32.end [16/16] 0.0, 128
    %v672 = vpop.trf.xlu0
    %v673 = vpop.trf.xlu0
    %v674 = vpop.trf.xlu0
    %v675 = vpop.trf.xlu0
    %v676 = vpop.trf.xlu0
    %v677 = vpop.trf.xlu0
    %v678 = vpop.trf.xlu0
    %v679 = vpop.trf.xlu0
    %v680 = vpop.trf.xlu0
    %v681 = vpop.trf.xlu0
    %v682 = vpop.trf.xlu0
    %v683 = vpop.trf.xlu0
    %v684 = vpop.trf.xlu0
    %v685 = vpop.trf.xlu0
    %v686 = vpop.trf.xlu0
    %v687 = vpop.trf.xlu0
    %v688 = vmul.f32 %v441, %v581
    %v689 = vsel %vm583, %v688, 0.0
    %690 = vadd.xlane.f32.xlu0 %v689
    %v691 = vpop.xlane.xlu0 %690
    %v692 = vrot.slane %v691, 4
    %v693 = vadd.f32 %v691, %v692
    %v694 = vrot.slane %v693, 2
    %v695 = vadd.f32 %v693, %v694
    %v696 = vrot.slane %v695, 1
    %v697 = vadd.f32 %v695, %v696
    %s698 = vtos %v697
    %v699 = vmul.f32 %v441, %v653
    %v700 = vsel %vm583, %v699, 0.0
    %701 = vadd.xlane.f32.xlu0 %v700
    %v702 = vpop.xlane.xlu0 %701
    %v703 = vrot.slane %v702, 4
    %v704 = vadd.f32 %v702, %v703
    %v705 = vrot.slane %v704, 2
    %v706 = vadd.f32 %v704, %v705
    %v707 = vrot.slane %v706, 1
    %v708 = vadd.f32 %v706, %v707
    %s709 = vtos %v708
    %v710 = vmul.f32 %v653, %v672
    %v711 = vsel %vm583, %v710, 0.0
    %712 = vadd.xlane.f32.xlu0 %v711
    %v713 = vpop.xlane.xlu0 %712
    %v714 = vrot.slane %v713, 4
    %v715 = vadd.f32 %v713, %v714
    %v716 = vrot.slane %v715, 2
    %v717 = vadd.f32 %v715, %v716
    %v718 = vrot.slane %v717, 1
    %v719 = vadd.f32 %v717, %v718
    %s720 = vtos %v719
    %721 = vxpose.xlu0.b32.start [1/16] %v653, 128
    %722 = vxpose.xlu0.b32.cont [2/16] 0.0, 128
    %723 = vxpose.xlu0.b32.cont [3/16] 0.0, 128
    %724 = vxpose.xlu0.b32.cont [4/16] 0.0, 128
    %725 = vxpose.xlu0.b32.cont [5/16] 0.0, 128
    %726 = vxpose.xlu0.b32.cont [6/16] 0.0, 128
    %727 = vxpose.xlu0.b32.cont [7/16] 0.0, 128
    %728 = vxpose.xlu0.b32.cont [8/16] 0.0, 128
    %729 = vxpose.xlu0.b32.cont [9/16] 0.0, 128
    %730 = vxpose.xlu0.b32.cont [10/16] 0.0, 128
    %731 = vxpose.xlu0.b32.cont [11/16] 0.0, 128
    %732 = vxpose.xlu0.b32.cont [12/16] 0.0, 128
    %733 = vxpose.xlu0.b32.cont [13/16] 0.0, 128
    %734 = vxpose.xlu0.b32.cont [14/16] 0.0, 128
    %735 = vxpose.xlu0.b32.cont [15/16] 0.0, 128
    %736 = vxpose.xlu0.b32.end [16/16] 0.0, 128
    %v737 = vpop.trf.xlu0
    %v738 = vpop.trf.xlu0
    %v739 = vpop.trf.xlu0
    %v740 = vpop.trf.xlu0
    %v741 = vpop.trf.xlu0
    %v742 = vpop.trf.xlu0
    %v743 = vpop.trf.xlu0
    %v744 = vpop.trf.xlu0
    %v745 = vpop.trf.xlu0
    %v746 = vpop.trf.xlu0
    %v747 = vpop.trf.xlu0
    %v748 = vpop.trf.xlu0
    %v749 = vpop.trf.xlu0
    %v750 = vpop.trf.xlu0
    %v751 = vpop.trf.xlu0
    %v752 = vpop.trf.xlu0
    %v753 = vmul.f32 %v653, %v737
    %v754 = vsel %vm583, %v753, 0.0
    %755 = vadd.xlane.f32.xlu0 %v754
    %v756 = vpop.xlane.xlu0 %755
    %v757 = vrot.slane %v756, 4
    %v758 = vadd.f32 %v756, %v757
    %v759 = vrot.slane %v758, 2
    %v760 = vadd.f32 %v758, %v759
    %v761 = vrot.slane %v760, 1
    %v762 = vadd.f32 %v760, %v761
    %s763 = vtos %v762
    %s764 = smul.f32 %s709, 0.5
    %s765 = ssub.f32 %s698, %s764
    %s766 = smul.f32 %s720, 0.33333334
    %s767 = sadd.f32 %s765, %s766
    %s768 = smul.f32 %s763, 0.25
    %s769 = ssub.f32 %s767, %s768
    %s770 = smul.f32 %s769, -1.0
    %772 = vrot.lane.b32.xlu0 %v578, 120
    %v773 = vpop.permute.xlu0 %772
    %v775 = vsel %vm583, %v773, 0
    %777 = vmatprep.subr.mxu0 0.0
    %778 = vmatpush1.msra.mxu0 %v773
    %779 = vmatprep.subr.mxu0 0.0
    %780 = vmatpush1.msra.mxu0 0.0
    %781 = vmatprep.subr.mxu0 0.0
    %782 = vmatpush1.msra.mxu0 0.0
    %783 = vmatprep.subr.mxu0 0.0
    %784 = vmatpush1.msra.mxu0 0.0
    %785 = vmatprep.subr.mxu0 0.0
    %786 = vmatpush1.msra.mxu0 0.0
    %787 = vmatprep.subr.mxu0 0.0
    %788 = vmatpush1.msra.mxu0 0.0
    %789 = vmatprep.subr.mxu0 0.0
    %790 = vmatpush1.msra.mxu0 0.0
    %791 = vmatprep.subr.mxu0 0.0
    %792 = vmatpush1.msra.mxu0 0.0
    %793 = vmatprep.subr.mxu0 0.0
    %794 = vmatpush1.msra.mxu0 0.0
    %795 = vmatprep.subr.mxu0 0.0
    %796 = vmatpush1.msra.mxu0 0.0
    %797 = vmatprep.subr.mxu0 0.0
    %798 = vmatpush1.msra.mxu0 0.0
    %799 = vmatprep.subr.mxu0 0.0
    %800 = vmatpush1.msra.mxu0 0.0
    %801 = vmatprep.subr.mxu0 0.0
    %802 = vmatpush1.msra.mxu0 0.0
    %803 = vmatprep.subr.mxu0 0.0
    %804 = vmatpush1.msra.mxu0 0.0
    %805 = vmatprep.subr.mxu0 0.0
    %806 = vmatpush1.msra.mxu0 0.0
    %807 = vmatprep.subr.mxu0 0.0
    %808 = vmatpush1.msra.mxu0 0.0
    %809 = vmatprep.subr.mxu0 0.0
    %810 = vmatpush1.msra.mxu0 0.0
    %811 = vmatprep.subr.mxu0 0.0
    %812 = vmatpush1.msra.mxu0 0.0
    %813 = vmatprep.subr.mxu0 0.0
    %814 = vmatpush1.msra.mxu0 0.0
    %815 = vmatprep.subr.mxu0 0.0
    %816 = vmatpush1.msra.mxu0 0.0
    %817 = vmatprep.subr.mxu0 0.0
    %818 = vmatpush1.msra.mxu0 0.0
    %819 = vmatprep.subr.mxu0 0.0
    %820 = vmatpush1.msra.mxu0 0.0
    %821 = vmatprep.subr.mxu0 0.0
    %822 = vmatpush1.msra.mxu0 0.0
    %823 = vmatprep.subr.mxu0 0.0
    %824 = vmatpush1.msra.mxu0 0.0
    %825 = vmatprep.subr.mxu0 0.0
    %826 = vmatpush1.msra.mxu0 0.0
    %827 = vmatprep.subr.mxu0 0.0
    %828 = vmatpush1.msra.mxu0 0.0
    %829 = vmatprep.subr.mxu0 0.0
    %830 = vmatpush1.msra.mxu0 0.0
    %831 = vmatprep.subr.mxu0 0.0
    %832 = vmatpush1.msra.mxu0 0.0
    %833 = vmatprep.subr.mxu0 0.0
    %834 = vmatpush1.msra.mxu0 0.0
    %835 = vmatprep.subr.mxu0 0.0
    %836 = vmatpush1.msra.mxu0 0.0
    %837 = vmatprep.subr.mxu0 0.0
    %838 = vmatpush1.msra.mxu0 0.0
    %839 = vmatprep.subr.mxu0 0.0
    %840 = vmatpush1.msra.mxu0 0.0
    %841 = vmatprep.mubr.f32.mxu0 0.0
    %842 = vmatmul.mubr.f32.gmra.mrb[0].mxu0 %v775
    %v843 = vpop.f32.mrb[0].mxu0
    %v844 = vadd.f32 0.0, %v843
    %v845 = vpop.f32.mrb[0].mxu0
    %846 = vdwg.mxu0
    %v848 = vsel %vm583, %v844, 0
    %850 = vmatprep.subr.mxu0 0.0
    %851 = vmatpush1.msra.mxu0 %v773
    %852 = vmatprep.subr.mxu0 0.0
    %853 = vmatpush1.msra.mxu0 0.0
    %854 = vmatprep.subr.mxu0 0.0
    %855 = vmatpush1.msra.mxu0 0.0
    %856 = vmatprep.subr.mxu0 0.0
    %857 = vmatpush1.msra.mxu0 0.0
    %858 = vmatprep.subr.mxu0 0.0
    %859 = vmatpush1.msra.mxu0 0.0
    %860 = vmatprep.subr.mxu0 0.0
    %861 = vmatpush1.msra.mxu0 0.0
    %862 = vmatprep.subr.mxu0 0.0
    %863 = vmatpush1.msra.mxu0 0.0
    %864 = vmatprep.subr.mxu0 0.0
    %865 = vmatpush1.msra.mxu0 0.0
    %866 = vmatprep.subr.mxu0 0.0
    %867 = vmatpush1.msra.mxu0 0.0
    %868 = vmatprep.subr.mxu0 0.0
    %869 = vmatpush1.msra.mxu0 0.0
    %870 = vmatprep.subr.mxu0 0.0
    %871 = vmatpush1.msra.mxu0 0.0
    %872 = vmatprep.subr.mxu0 0.0
    %873 = vmatpush1.msra.mxu0 0.0
    %874 = vmatprep.subr.mxu0 0.0
    %875 = vmatpush1.msra.mxu0 0.0
    %876 = vmatprep.subr.mxu0 0.0
    %877 = vmatpush1.msra.mxu0 0.0
    %878 = vmatprep.subr.mxu0 0.0
    %879 = vmatpush1.msra.mxu0 0.0
    %880 = vmatprep.subr.mxu0 0.0
    %881 = vmatpush1.msra.mxu0 0.0
    %882 = vmatprep.subr.mxu0 0.0
    %883 = vmatpush1.msra.mxu0 0.0
    %884 = vmatprep.subr.mxu0 0.0
    %885 = vmatpush1.msra.mxu0 0.0
    %886 = vmatprep.subr.mxu0 0.0
    %887 = vmatpush1.msra.mxu0 0.0
    %888 = vmatprep.subr.mxu0 0.0
    %889 = vmatpush1.msra.mxu0 0.0
    %890 = vmatprep.subr.mxu0 0.0
    %891 = vmatpush1.msra.mxu0 0.0
    %892 = vmatprep.subr.mxu0 0.0
    %893 = vmatpush1.msra.mxu0 0.0
    %894 = vmatprep.subr.mxu0 0.0
    %895 = vmatpush1.msra.mxu0 0.0
    %896 = vmatprep.subr.mxu0 0.0
    %897 = vmatpush1.msra.mxu0 0.0
    %898 = vmatprep.subr.mxu0 0.0
    %899 = vmatpush1.msra.mxu0 0.0
    %900 = vmatprep.subr.mxu0 0.0
    %901 = vmatpush1.msra.mxu0 0.0
    %902 = vmatprep.subr.mxu0 0.0
    %903 = vmatpush1.msra.mxu0 0.0
    %904 = vmatprep.subr.mxu0 0.0
    %905 = vmatpush1.msra.mxu0 0.0
    %906 = vmatprep.subr.mxu0 0.0
    %907 = vmatpush1.msra.mxu0 0.0
    %908 = vmatprep.subr.mxu0 0.0
    %909 = vmatpush1.msra.mxu0 0.0
    %910 = vmatprep.subr.mxu0 0.0
    %911 = vmatpush1.msra.mxu0 0.0
    %912 = vmatprep.subr.mxu0 0.0
    %913 = vmatpush1.msra.mxu0 0.0
    %914 = vmatprep.mubr.f32.mxu0 0.0
    %915 = vmatmul.mubr.f32.gmra.mrb[0].mxu0 %v848
    %v916 = vpop.f32.mrb[0].mxu0
    %v917 = vadd.f32 0.0, %v916
    %v918 = vpop.f32.mrb[0].mxu0
    %919 = vdwg.mxu0
    %920 = vmatprep.subr.mxu0 0.0
    %921 = vmatpush1.msra.mxu0 %v844
    %922 = vmatprep.subr.mxu0 0.0
    %923 = vmatpush1.msra.mxu0 0.0
    %924 = vmatprep.subr.mxu0 0.0
    %925 = vmatpush1.msra.mxu0 0.0
    %926 = vmatprep.subr.mxu0 0.0
    %927 = vmatpush1.msra.mxu0 0.0
    %928 = vmatprep.subr.mxu0 0.0
    %929 = vmatpush1.msra.mxu0 0.0
    %930 = vmatprep.subr.mxu0 0.0
    %931 = vmatpush1.msra.mxu0 0.0
    %932 = vmatprep.subr.mxu0 0.0
    %933 = vmatpush1.msra.mxu0 0.0
    %934 = vmatprep.subr.mxu0 0.0
    %935 = vmatpush1.msra.mxu0 0.0
    %936 = vmatprep.subr.mxu0 0.0
    %937 = vmatpush1.msra.mxu0 0.0
    %938 = vmatprep.subr.mxu0 0.0
    %939 = vmatpush1.msra.mxu0 0.0
    %940 = vmatprep.subr.mxu0 0.0
    %941 = vmatpush1.msra.mxu0 0.0
    %942 = vmatprep.subr.mxu0 0.0
    %943 = vmatpush1.msra.mxu0 0.0
    %944 = vmatprep.subr.mxu0 0.0
    %945 = vmatpush1.msra.mxu0 0.0
    %946 = vmatprep.subr.mxu0 0.0
    %947 = vmatpush1.msra.mxu0 0.0
    %948 = vmatprep.subr.mxu0 0.0
    %949 = vmatpush1.msra.mxu0 0.0
    %950 = vmatprep.subr.mxu0 0.0
    %951 = vmatpush1.msra.mxu0 0.0
    %952 = vmatprep.subr.mxu0 0.0
    %953 = vmatpush1.msra.mxu0 0.0
    %954 = vmatprep.subr.mxu0 0.0
    %955 = vmatpush1.msra.mxu0 0.0
    %956 = vmatprep.subr.mxu0 0.0
    %957 = vmatpush1.msra.mxu0 0.0
    %958 = vmatprep.subr.mxu0 0.0
    %959 = vmatpush1.msra.mxu0 0.0
    %960 = vmatprep.subr.mxu0 0.0
    %961 = vmatpush1.msra.mxu0 0.0
    %962 = vmatprep.subr.mxu0 0.0
    %963 = vmatpush1.msra.mxu0 0.0
    %964 = vmatprep.subr.mxu0 0.0
    %965 = vmatpush1.msra.mxu0 0.0
    %966 = vmatprep.subr.mxu0 0.0
    %967 = vmatpush1.msra.mxu0 0.0
    %968 = vmatprep.subr.mxu0 0.0
    %969 = vmatpush1.msra.mxu0 0.0
    %970 = vmatprep.subr.mxu0 0.0
    %971 = vmatpush1.msra.mxu0 0.0
    %972 = vmatprep.subr.mxu0 0.0
    %973 = vmatpush1.msra.mxu0 0.0
    %974 = vmatprep.subr.mxu0 0.0
    %975 = vmatpush1.msra.mxu0 0.0
    %976 = vmatprep.subr.mxu0 0.0
    %977 = vmatpush1.msra.mxu0 0.0
    %978 = vmatprep.subr.mxu0 0.0
    %979 = vmatpush1.msra.mxu0 0.0
    %980 = vmatprep.subr.mxu0 0.0
    %981 = vmatpush1.msra.mxu0 0.0
    %982 = vmatprep.subr.mxu0 0.0
    %983 = vmatpush1.msra.mxu0 0.0
    %984 = vmatprep.mubr.f32.mxu0 0.0
    %985 = vmatmul.mubr.f32.gmra.mrb[0].mxu0 %v848
    %v986 = vpop.f32.mrb[0].mxu0
    %v987 = vadd.f32 0.0, %v986
    %v988 = vpop.f32.mrb[0].mxu0
    %989 = vdwg.mxu0
    %v990 = vmul.f32 %v844, 0.5
    %992 = vrot.lane.b32.xlu0 %v990, 8
    %v993 = vpop.permute.xlu0 %992
    %v995 = vsub.f32 %v578, %v993
    %v996 = vmul.f32 %v917, 0.33333334
    %998 = vrot.lane.b32.xlu0 %v996, 8
    %v999 = vpop.permute.xlu0 %998
    %v1001 = vadd.f32 %v995, %v999
    %v1002 = vmul.f32 %v987, 0.25
    %1004 = vrot.lane.b32.xlu0 %v1002, 8
    %v1005 = vpop.permute.xlu0 %1004
    %v1007 = vsub.f32 %v1001, %v1005
    %1009 = vrot.lane.b32.xlu0 %v1007, 120
    %v1010 = vpop.permute.xlu0 %1009
    %v1012 = vmul.f32 %v577, %v1010
    %v1013 = vsel %vm583, %v1012, 0.0
    %1014 = vadd.xlane.f32.xlu0 %v1013
    %v1015 = vpop.xlane.xlu0 %1014
    %v1016 = vrot.slane %v1015, 4
    %v1017 = vadd.f32 %v1015, %v1016
    %v1018 = vrot.slane %v1017, 2
    %v1019 = vadd.f32 %v1017, %v1018
    %v1020 = vrot.slane %v1019, 1
    %v1021 = vadd.f32 %v1019, %v1020
    %s1022 = vtos %v1021
    %s1023 = ssub.f32 0.0, %s1022
    %v1024 = vmul.f32 %v441, %v1010
    %v1025 = vsel %vm583, %v1024, 0.0
    %1026 = vadd.xlane.f32.xlu0 %v1025
    %v1027 = vpop.xlane.xlu0 %1026
    %v1028 = vrot.slane %v1027, 4
    %v1029 = vadd.f32 %v1027, %v1028
    %v1030 = vrot.slane %v1029, 2
    %v1031 = vadd.f32 %v1029, %v1030
    %v1032 = vrot.slane %v1031, 1
    %v1033 = vadd.f32 %v1031, %v1032
    %s1034 = vtos %v1033
    %s1035 = ssub.f32 %s1023, %s1034
    %1037 = vrot.lane.b32.xlu0 %v434, 32
    %v1038 = vpop.permute.xlu0 %1037
    %v1040 = vmul.f32 %v302, %v302
    %v1041 = vmul.f32 %v1038, %v1038
    %v1042 = vsel %vm448, %v1040, 0.0
    %v1043 = vrot.slane %v1042, 4
    %v1044 = vadd.f32 %v1042, %v1043
    %v1045 = vrot.slane %v1044, 2
    %v1046 = vadd.f32 %v1044, %v1045
    %v1047 = vrot.slane %v1046, 1
    %v1048 = vadd.f32 %v1046, %v1047
    %v1049 = vsel %vm448, %v1041, 0.0
    %v1050 = vrot.slane %v1049, 4
    %v1051 = vadd.f32 %v1049, %v1050
    %v1052 = vrot.slane %v1051, 2
    %v1053 = vadd.f32 %v1051, %v1052
    %v1054 = vrot.slane %v1053, 1
    %v1055 = vadd.f32 %v1053, %v1054
    %v1056 = vmax.f32 %v1048, 1e-24
    %v1057 = vmax.f32 %v1055, 1e-24
    %v1058 = vrsqrt.pop %v1056
    %v1059 = vrsqrt.pop %v1057
    %v1060 = vmul.f32 %v302, %v1058
    %v1061 = vmul.f32 %v1038, %v1059
    %1064 = vrot.lane.b32.xlu0 %v1060, 96
    %v1065 = vpop.permute.xlu0 %1064
    %1066 = vrot.lane.b32.xlu0 %v1061, 96
    %v1067 = vpop.permute.xlu0 %1066
    %v1070 = vsel %vm175, %v1065, 0.0
    %1071 = vadd.xlane.f32.xlu0 %v1070
    %v1072 = vpop.xlane.xlu0 %1071
    %v1073 = vsel %vm175, %v1067, 0.0
    %1074 = vadd.xlane.f32.xlu0 %v1073
    %v1075 = vpop.xlane.xlu0 %1074
    %v1076 = vmul.f32 %v1072, %v483
    %v1077 = vmul.f32 %v1075, %v483
    %v1078 = vsub.f32 %v1060, %v1076
    %v1079 = vsub.f32 %v1061, %v1077
    %1082 = vrot.lane.b32.xlu0 %v1078, 96
    %v1083 = vpop.permute.xlu0 %1082
    %1084 = vrot.lane.b32.xlu0 %v1079, 96
    %v1085 = vpop.permute.xlu0 %1084
    %v1086 = vsel %vm175, %v1065, 0
    %v1088 = vsel %vm175, %v1067, 0
    %v1090 = vsel %vm175, %v1083, 0
    %v1092 = vsel %vm175, %v1085, 0
    %1094 = vmatprep.subr.mxu0 0.0
    %1095 = vmatpush1.xpose.msra.mxu0 %v1090
    %1096 = vmatprep.subr.mxu0 0.0
    %1097 = vmatpush1.xpose.msra.mxu0 %v1092
    %1098 = vmatprep.subr.mxu0 0.0
    %1099 = vmatpush1.xpose.msra.mxu0 0.0
    %1100 = vmatprep.subr.mxu0 0.0
    %1101 = vmatpush1.xpose.msra.mxu0 0.0
    %1102 = vmatprep.subr.mxu0 0.0
    %1103 = vmatpush1.xpose.msra.mxu0 0.0
    %1104 = vmatprep.subr.mxu0 0.0
    %1105 = vmatpush1.xpose.msra.mxu0 0.0
    %1106 = vmatprep.subr.mxu0 0.0
    %1107 = vmatpush1.xpose.msra.mxu0 0.0
    %1108 = vmatprep.subr.mxu0 0.0
    %1109 = vmatpush1.xpose.msra.mxu0 0.0
    %1110 = vmatprep.subr.mxu0 0.0
    %1111 = vmatpush1.xpose.msra.mxu0 0.0
    %1112 = vmatprep.subr.mxu0 0.0
    %1113 = vmatpush1.xpose.msra.mxu0 0.0
    %1114 = vmatprep.subr.mxu0 0.0
    %1115 = vmatpush1.xpose.msra.mxu0 0.0
    %1116 = vmatprep.subr.mxu0 0.0
    %1117 = vmatpush1.xpose.msra.mxu0 0.0
    %1118 = vmatprep.subr.mxu0 0.0
    %1119 = vmatpush1.xpose.msra.mxu0 0.0
    %1120 = vmatprep.subr.mxu0 0.0
    %1121 = vmatpush1.xpose.msra.mxu0 0.0
    %1122 = vmatprep.subr.mxu0 0.0
    %1123 = vmatpush1.xpose.msra.mxu0 0.0
    %1124 = vmatprep.subr.mxu0 0.0
    %1125 = vmatpush1.xpose.msra.mxu0 0.0
    %1126 = vmatprep.subr.mxu0 0.0
    %1127 = vmatpush1.xpose.msra.mxu0 0.0
    %1128 = vmatprep.subr.mxu0 0.0
    %1129 = vmatpush1.xpose.msra.mxu0 0.0
    %1130 = vmatprep.subr.mxu0 0.0
    %1131 = vmatpush1.xpose.msra.mxu0 0.0
    %1132 = vmatprep.subr.mxu0 0.0
    %1133 = vmatpush1.xpose.msra.mxu0 0.0
    %1134 = vmatprep.subr.mxu0 0.0
    %1135 = vmatpush1.xpose.msra.mxu0 0.0
    %1136 = vmatprep.subr.mxu0 0.0
    %1137 = vmatpush1.xpose.msra.mxu0 0.0
    %1138 = vmatprep.subr.mxu0 0.0
    %1139 = vmatpush1.xpose.msra.mxu0 0.0
    %1140 = vmatprep.subr.mxu0 0.0
    %1141 = vmatpush1.xpose.msra.mxu0 0.0
    %1142 = vmatprep.subr.mxu0 0.0
    %1143 = vmatpush1.xpose.msra.mxu0 0.0
    %1144 = vmatprep.subr.mxu0 0.0
    %1145 = vmatpush1.xpose.msra.mxu0 0.0
    %1146 = vmatprep.subr.mxu0 0.0
    %1147 = vmatpush1.xpose.msra.mxu0 0.0
    %1148 = vmatprep.subr.mxu0 0.0
    %1149 = vmatpush1.xpose.msra.mxu0 0.0
    %1150 = vmatprep.subr.mxu0 0.0
    %1151 = vmatpush1.xpose.msra.mxu0 0.0
    %1152 = vmatprep.subr.mxu0 0.0
    %1153 = vmatpush1.xpose.msra.mxu0 0.0
    %1154 = vmatprep.subr.mxu0 0.0
    %1155 = vmatpush1.xpose.msra.mxu0 0.0
    %1156 = vmatprep.subr.mxu0 0.0
    %1157 = vmatpush1.xpose.msra.mxu0 0.0
    %1158 = vmatprep.mubr.f32.mxu0 0.0
    %1159 = vmatmul.mubr.f32.gmra.mrb[0].mxu0 %v1086
    %v1160 = vpop.f32.mrb[0].mxu0
    %v1161 = vadd.f32 0.0, %v1160
    %v1162 = vpop.f32.mrb[0].mxu0
    %1163 = vmatprep.mubr.f32.mxu0 0.0
    %1164 = vmatmul.mubr.f32.gmra.mrb[0].mxu0 %v1088
    %v1165 = vpop.f32.mrb[0].mxu0
    %v1166 = vadd.f32 0.0, %v1165
    %v1167 = vpop.f32.mrb[0].mxu0
    %1168 = vdwg.mxu0
    %v1169 = vmul.f32 %v1161, 0.03125
    %v1170 = vmul.f32 %v1166, 0.03125
    %1172 = vrot.lane.b32.xlu0 %v1169, 120
    %v1173 = vpop.permute.xlu0 %1172
    %v1175 = vsel %vm583, %v1173, 0
    %1177 = vmatprep.subr.mxu0 0.0
    %1178 = vmatpush1.msra.mxu0 %v1173
    %1179 = vmatprep.subr.mxu0 0.0
    %1180 = vmatpush1.msra.mxu0 0.0
    %1181 = vmatprep.subr.mxu0 0.0
    %1182 = vmatpush1.msra.mxu0 0.0
    %1183 = vmatprep.subr.mxu0 0.0
    %1184 = vmatpush1.msra.mxu0 0.0
    %1185 = vmatprep.subr.mxu0 0.0
    %1186 = vmatpush1.msra.mxu0 0.0
    %1187 = vmatprep.subr.mxu0 0.0
    %1188 = vmatpush1.msra.mxu0 0.0
    %1189 = vmatprep.subr.mxu0 0.0
    %1190 = vmatpush1.msra.mxu0 0.0
    %1191 = vmatprep.subr.mxu0 0.0
    %1192 = vmatpush1.msra.mxu0 0.0
    %1193 = vmatprep.subr.mxu0 0.0
    %1194 = vmatpush1.msra.mxu0 0.0
    %1195 = vmatprep.subr.mxu0 0.0
    %1196 = vmatpush1.msra.mxu0 0.0
    %1197 = vmatprep.subr.mxu0 0.0
    %1198 = vmatpush1.msra.mxu0 0.0
    %1199 = vmatprep.subr.mxu0 0.0
    %1200 = vmatpush1.msra.mxu0 0.0
    %1201 = vmatprep.subr.mxu0 0.0
    %1202 = vmatpush1.msra.mxu0 0.0
    %1203 = vmatprep.subr.mxu0 0.0
    %1204 = vmatpush1.msra.mxu0 0.0
    %1205 = vmatprep.subr.mxu0 0.0
    %1206 = vmatpush1.msra.mxu0 0.0
    %1207 = vmatprep.subr.mxu0 0.0
    %1208 = vmatpush1.msra.mxu0 0.0
    %1209 = vmatprep.subr.mxu0 0.0
    %1210 = vmatpush1.msra.mxu0 0.0
    %1211 = vmatprep.subr.mxu0 0.0
    %1212 = vmatpush1.msra.mxu0 0.0
    %1213 = vmatprep.subr.mxu0 0.0
    %1214 = vmatpush1.msra.mxu0 0.0
    %1215 = vmatprep.subr.mxu0 0.0
    %1216 = vmatpush1.msra.mxu0 0.0
    %1217 = vmatprep.subr.mxu0 0.0
    %1218 = vmatpush1.msra.mxu0 0.0
    %1219 = vmatprep.subr.mxu0 0.0
    %1220 = vmatpush1.msra.mxu0 0.0
    %1221 = vmatprep.subr.mxu0 0.0
    %1222 = vmatpush1.msra.mxu0 0.0
    %1223 = vmatprep.subr.mxu0 0.0
    %1224 = vmatpush1.msra.mxu0 0.0
    %1225 = vmatprep.subr.mxu0 0.0
    %1226 = vmatpush1.msra.mxu0 0.0
    %1227 = vmatprep.subr.mxu0 0.0
    %1228 = vmatpush1.msra.mxu0 0.0
    %1229 = vmatprep.subr.mxu0 0.0
    %1230 = vmatpush1.msra.mxu0 0.0
    %1231 = vmatprep.subr.mxu0 0.0
    %1232 = vmatpush1.msra.mxu0 0.0
    %1233 = vmatprep.subr.mxu0 0.0
    %1234 = vmatpush1.msra.mxu0 0.0
    %1235 = vmatprep.subr.mxu0 0.0
    %1236 = vmatpush1.msra.mxu0 0.0
    %1237 = vmatprep.subr.mxu0 0.0
    %1238 = vmatpush1.msra.mxu0 0.0
    %1239 = vmatprep.subr.mxu0 0.0
    %1240 = vmatpush1.msra.mxu0 0.0
    %1241 = vmatprep.mubr.f32.mxu0 0.0
    %1242 = vmatmul.mubr.f32.gmra.mrb[0].mxu0 %v1175
    %v1243 = vpop.f32.mrb[0].mxu0
    %v1244 = vadd.f32 0.0, %v1243
    %v1245 = vpop.f32.mrb[0].mxu0
    %1246 = vdwg.mxu0
    %1247 = vxpose.xlu0.b32.start [1/16] %v1173, 128
    %1248 = vxpose.xlu0.b32.cont [2/16] 0.0, 128
    %1249 = vxpose.xlu0.b32.cont [3/16] 0.0, 128
    %1250 = vxpose.xlu0.b32.cont [4/16] 0.0, 128
    %1251 = vxpose.xlu0.b32.cont [5/16] 0.0, 128
    %1252 = vxpose.xlu0.b32.cont [6/16] 0.0, 128
    %1253 = vxpose.xlu0.b32.cont [7/16] 0.0, 128
    %1254 = vxpose.xlu0.b32.cont [8/16] 0.0, 128
    %1255 = vxpose.xlu0.b32.cont [9/16] 0.0, 128
    %1256 = vxpose.xlu0.b32.cont [10/16] 0.0, 128
    %1257 = vxpose.xlu0.b32.cont [11/16] 0.0, 128
    %1258 = vxpose.xlu0.b32.cont [12/16] 0.0, 128
    %1259 = vxpose.xlu0.b32.cont [13/16] 0.0, 128
    %1260 = vxpose.xlu0.b32.cont [14/16] 0.0, 128
    %1261 = vxpose.xlu0.b32.cont [15/16] 0.0, 128
    %1262 = vxpose.xlu0.b32.end [16/16] 0.0, 128
    %v1263 = vpop.trf.xlu0
    %v1264 = vpop.trf.xlu0
    %v1265 = vpop.trf.xlu0
    %v1266 = vpop.trf.xlu0
    %v1267 = vpop.trf.xlu0
    %v1268 = vpop.trf.xlu0
    %v1269 = vpop.trf.xlu0
    %v1270 = vpop.trf.xlu0
    %v1271 = vpop.trf.xlu0
    %v1272 = vpop.trf.xlu0
    %v1273 = vpop.trf.xlu0
    %v1274 = vpop.trf.xlu0
    %v1275 = vpop.trf.xlu0
    %v1276 = vpop.trf.xlu0
    %v1277 = vpop.trf.xlu0
    %v1278 = vpop.trf.xlu0
    %v1279 = vmul.f32 %v441, %v1173
    %v1280 = vsel %vm583, %v1279, 0.0
    %1281 = vadd.xlane.f32.xlu0 %v1280
    %v1282 = vpop.xlane.xlu0 %1281
    %v1283 = vrot.slane %v1282, 4
    %v1284 = vadd.f32 %v1282, %v1283
    %v1285 = vrot.slane %v1284, 2
    %v1286 = vadd.f32 %v1284, %v1285
    %v1287 = vrot.slane %v1286, 1
    %v1288 = vadd.f32 %v1286, %v1287
    %s1289 = vtos %v1288
    %v1290 = vmul.f32 %v441, %v1244
    %v1291 = vsel %vm583, %v1290, 0.0
    %1292 = vadd.xlane.f32.xlu0 %v1291
    %v1293 = vpop.xlane.xlu0 %1292
    %v1294 = vrot.slane %v1293, 4
    %v1295 = vadd.f32 %v1293, %v1294
    %v1296 = vrot.slane %v1295, 2
    %v1297 = vadd.f32 %v1295, %v1296
    %v1298 = vrot.slane %v1297, 1
    %v1299 = vadd.f32 %v1297, %v1298
    %s1300 = vtos %v1299
    %v1301 = vmul.f32 %v1244, %v1263
    %v1302 = vsel %vm583, %v1301, 0.0
    %1303 = vadd.xlane.f32.xlu0 %v1302
    %v1304 = vpop.xlane.xlu0 %1303
    %v1305 = vrot.slane %v1304, 4
    %v1306 = vadd.f32 %v1304, %v1305
    %v1307 = vrot.slane %v1306, 2
    %v1308 = vadd.f32 %v1306, %v1307
    %v1309 = vrot.slane %v1308, 1
    %v1310 = vadd.f32 %v1308, %v1309
    %s1311 = vtos %v1310
    %1312 = vxpose.xlu0.b32.start [1/16] %v1244, 128
    %1313 = vxpose.xlu0.b32.cont [2/16] 0.0, 128
    %1314 = vxpose.xlu0.b32.cont [3/16] 0.0, 128
    %1315 = vxpose.xlu0.b32.cont [4/16] 0.0, 128
    %1316 = vxpose.xlu0.b32.cont [5/16] 0.0, 128
    %1317 = vxpose.xlu0.b32.cont [6/16] 0.0, 128
    %1318 = vxpose.xlu0.b32.cont [7/16] 0.0, 128
    %1319 = vxpose.xlu0.b32.cont [8/16] 0.0, 128
    %1320 = vxpose.xlu0.b32.cont [9/16] 0.0, 128
    %1321 = vxpose.xlu0.b32.cont [10/16] 0.0, 128
    %1322 = vxpose.xlu0.b32.cont [11/16] 0.0, 128
    %1323 = vxpose.xlu0.b32.cont [12/16] 0.0, 128
    %1324 = vxpose.xlu0.b32.cont [13/16] 0.0, 128
    %1325 = vxpose.xlu0.b32.cont [14/16] 0.0, 128
    %1326 = vxpose.xlu0.b32.cont [15/16] 0.0, 128
    %1327 = vxpose.xlu0.b32.end [16/16] 0.0, 128
    %v1328 = vpop.trf.xlu0
    %v1329 = vpop.trf.xlu0
    %v1330 = vpop.trf.xlu0
    %v1331 = vpop.trf.xlu0
    %v1332 = vpop.trf.xlu0
    %v1333 = vpop.trf.xlu0
    %v1334 = vpop.trf.xlu0
    %v1335 = vpop.trf.xlu0
    %v1336 = vpop.trf.xlu0
    %v1337 = vpop.trf.xlu0
    %v1338 = vpop.trf.xlu0
    %v1339 = vpop.trf.xlu0
    %v1340 = vpop.trf.xlu0
    %v1341 = vpop.trf.xlu0
    %v1342 = vpop.trf.xlu0
    %v1343 = vpop.trf.xlu0
    %v1344 = vmul.f32 %v1244, %v1328
    %v1345 = vsel %vm583, %v1344, 0.0
    %1346 = vadd.xlane.f32.xlu0 %v1345
    %v1347 = vpop.xlane.xlu0 %1346
    %v1348 = vrot.slane %v1347, 4
    %v1349 = vadd.f32 %v1347, %v1348
    %v1350 = vrot.slane %v1349, 2
    %v1351 = vadd.f32 %v1349, %v1350
    %v1352 = vrot.slane %v1351, 1
    %v1353 = vadd.f32 %v1351, %v1352
    %s1354 = vtos %v1353
    %s1355 = smul.f32 %s1300, 0.5
    %s1356 = ssub.f32 %s1289, %s1355
    %s1357 = smul.f32 %s1311, 0.33333334
    %s1358 = sadd.f32 %s1356, %s1357
    %s1359 = smul.f32 %s1354, 0.25
    %s1360 = ssub.f32 %s1358, %s1359
    %s1361 = smul.f32 %s1360, -1.0
    %1363 = vrot.lane.b32.xlu0 %v1170, 120
    %v1364 = vpop.permute.xlu0 %1363
    %v1366 = vsel %vm583, %v1364, 0
    %1368 = vmatprep.subr.mxu0 0.0
    %1369 = vmatpush1.msra.mxu0 %v1364
    %1370 = vmatprep.subr.mxu0 0.0
    %1371 = vmatpush1.msra.mxu0 0.0
    %1372 = vmatprep.subr.mxu0 0.0
    %1373 = vmatpush1.msra.mxu0 0.0
    %1374 = vmatprep.subr.mxu0 0.0
    %1375 = vmatpush1.msra.mxu0 0.0
    %1376 = vmatprep.subr.mxu0 0.0
    %1377 = vmatpush1.msra.mxu0 0.0
    %1378 = vmatprep.subr.mxu0 0.0
    %1379 = vmatpush1.msra.mxu0 0.0
    %1380 = vmatprep.subr.mxu0 0.0
    %1381 = vmatpush1.msra.mxu0 0.0
    %1382 = vmatprep.subr.mxu0 0.0
    %1383 = vmatpush1.msra.mxu0 0.0
    %1384 = vmatprep.subr.mxu0 0.0
    %1385 = vmatpush1.msra.mxu0 0.0
    %1386 = vmatprep.subr.mxu0 0.0
    %1387 = vmatpush1.msra.mxu0 0.0
    %1388 = vmatprep.subr.mxu0 0.0
    %1389 = vmatpush1.msra.mxu0 0.0
    %1390 = vmatprep.subr.mxu0 0.0
    %1391 = vmatpush1.msra.mxu0 0.0
    %1392 = vmatprep.subr.mxu0 0.0
    %1393 = vmatpush1.msra.mxu0 0.0
    %1394 = vmatprep.subr.mxu0 0.0
    %1395 = vmatpush1.msra.mxu0 0.0
    %1396 = vmatprep.subr.mxu0 0.0
    %1397 = vmatpush1.msra.mxu0 0.0
    %1398 = vmatprep.subr.mxu0 0.0
    %1399 = vmatpush1.msra.mxu0 0.0
    %1400 = vmatprep.subr.mxu0 0.0
    %1401 = vmatpush1.msra.mxu0 0.0
    %1402 = vmatprep.subr.mxu0 0.0
    %1403 = vmatpush1.msra.mxu0 0.0
    %1404 = vmatprep.subr.mxu0 0.0
    %1405 = vmatpush1.msra.mxu0 0.0
    %1406 = vmatprep.subr.mxu0 0.0
    %1407 = vmatpush1.msra.mxu0 0.0
    %1408 = vmatprep.subr.mxu0 0.0
    %1409 = vmatpush1.msra.mxu0 0.0
    %1410 = vmatprep.subr.mxu0 0.0
    %1411 = vmatpush1.msra.mxu0 0.0
    %1412 = vmatprep.subr.mxu0 0.0
    %1413 = vmatpush1.msra.mxu0 0.0
    %1414 = vmatprep.subr.mxu0 0.0
    %1415 = vmatpush1.msra.mxu0 0.0
    %1416 = vmatprep.subr.mxu0 0.0
    %1417 = vmatpush1.msra.mxu0 0.0
    %1418 = vmatprep.subr.mxu0 0.0
    %1419 = vmatpush1.msra.mxu0 0.0
    %1420 = vmatprep.subr.mxu0 0.0
    %1421 = vmatpush1.msra.mxu0 0.0
    %1422 = vmatprep.subr.mxu0 0.0
    %1423 = vmatpush1.msra.mxu0 0.0
    %1424 = vmatprep.subr.mxu0 0.0
    %1425 = vmatpush1.msra.mxu0 0.0
    %1426 = vmatprep.subr.mxu0 0.0
    %1427 = vmatpush1.msra.mxu0 0.0
    %1428 = vmatprep.subr.mxu0 0.0
    %1429 = vmatpush1.msra.mxu0 0.0
    %1430 = vmatprep.subr.mxu0 0.0
    %1431 = vmatpush1.msra.mxu0 0.0
    %1432 = vmatprep.mubr.f32.mxu0 0.0
    %1433 = vmatmul.mubr.f32.gmra.mrb[0].mxu0 %v1366
    %v1434 = vpop.f32.mrb[0].mxu0
    %v1435 = vadd.f32 0.0, %v1434
    %v1436 = vpop.f32.mrb[0].mxu0
    %1437 = vdwg.mxu0
    %v1439 = vsel %vm583, %v1435, 0
    %1441 = vmatprep.subr.mxu0 0.0
    %1442 = vmatpush1.msra.mxu0 %v1364
    %1443 = vmatprep.subr.mxu0 0.0
    %1444 = vmatpush1.msra.mxu0 0.0
    %1445 = vmatprep.subr.mxu0 0.0
    %1446 = vmatpush1.msra.mxu0 0.0
    %1447 = vmatprep.subr.mxu0 0.0
    %1448 = vmatpush1.msra.mxu0 0.0
    %1449 = vmatprep.subr.mxu0 0.0
    %1450 = vmatpush1.msra.mxu0 0.0
    %1451 = vmatprep.subr.mxu0 0.0
    %1452 = vmatpush1.msra.mxu0 0.0
    %1453 = vmatprep.subr.mxu0 0.0
    %1454 = vmatpush1.msra.mxu0 0.0
    %1455 = vmatprep.subr.mxu0 0.0
    %1456 = vmatpush1.msra.mxu0 0.0
    %1457 = vmatprep.subr.mxu0 0.0
    %1458 = vmatpush1.msra.mxu0 0.0
    %1459 = vmatprep.subr.mxu0 0.0
    %1460 = vmatpush1.msra.mxu0 0.0
    %1461 = vmatprep.subr.mxu0 0.0
    %1462 = vmatpush1.msra.mxu0 0.0
    %1463 = vmatprep.subr.mxu0 0.0
    %1464 = vmatpush1.msra.mxu0 0.0
    %1465 = vmatprep.subr.mxu0 0.0
    %1466 = vmatpush1.msra.mxu0 0.0
    %1467 = vmatprep.subr.mxu0 0.0
    %1468 = vmatpush1.msra.mxu0 0.0
    %1469 = vmatprep.subr.mxu0 0.0
    %1470 = vmatpush1.msra.mxu0 0.0
    %1471 = vmatprep.subr.mxu0 0.0
    %1472 = vmatpush1.msra.mxu0 0.0
    %1473 = vmatprep.subr.mxu0 0.0
    %1474 = vmatpush1.msra.mxu0 0.0
    %1475 = vmatprep.subr.mxu0 0.0
    %1476 = vmatpush1.msra.mxu0 0.0
    %1477 = vmatprep.subr.mxu0 0.0
    %1478 = vmatpush1.msra.mxu0 0.0
    %1479 = vmatprep.subr.mxu0 0.0
    %1480 = vmatpush1.msra.mxu0 0.0
    %1481 = vmatprep.subr.mxu0 0.0
    %1482 = vmatpush1.msra.mxu0 0.0
    %1483 = vmatprep.subr.mxu0 0.0
    %1484 = vmatpush1.msra.mxu0 0.0
    %1485 = vmatprep.subr.mxu0 0.0
    %1486 = vmatpush1.msra.mxu0 0.0
    %1487 = vmatprep.subr.mxu0 0.0
    %1488 = vmatpush1.msra.mxu0 0.0
    %1489 = vmatprep.subr.mxu0 0.0
    %1490 = vmatpush1.msra.mxu0 0.0
    %1491 = vmatprep.subr.mxu0 0.0
    %1492 = vmatpush1.msra.mxu0 0.0
    %1493 = vmatprep.subr.mxu0 0.0
    %1494 = vmatpush1.msra.mxu0 0.0
    %1495 = vmatprep.subr.mxu0 0.0
    %1496 = vmatpush1.msra.mxu0 0.0
    %1497 = vmatprep.subr.mxu0 0.0
    %1498 = vmatpush1.msra.mxu0 0.0
    %1499 = vmatprep.subr.mxu0 0.0
    %1500 = vmatpush1.msra.mxu0 0.0
    %1501 = vmatprep.subr.mxu0 0.0
    %1502 = vmatpush1.msra.mxu0 0.0
    %1503 = vmatprep.subr.mxu0 0.0
    %1504 = vmatpush1.msra.mxu0 0.0
    %1505 = vmatprep.mubr.f32.mxu0 0.0
    %1506 = vmatmul.mubr.f32.gmra.mrb[0].mxu0 %v1439
    %v1507 = vpop.f32.mrb[0].mxu0
    %v1508 = vadd.f32 0.0, %v1507
    %v1509 = vpop.f32.mrb[0].mxu0
    %1510 = vdwg.mxu0
    %1511 = vmatprep.subr.mxu0 0.0
    %1512 = vmatpush1.msra.mxu0 %v1435
    %1513 = vmatprep.subr.mxu0 0.0
    %1514 = vmatpush1.msra.mxu0 0.0
    %1515 = vmatprep.subr.mxu0 0.0
    %1516 = vmatpush1.msra.mxu0 0.0
    %1517 = vmatprep.subr.mxu0 0.0
    %1518 = vmatpush1.msra.mxu0 0.0
    %1519 = vmatprep.subr.mxu0 0.0
    %1520 = vmatpush1.msra.mxu0 0.0
    %1521 = vmatprep.subr.mxu0 0.0
    %1522 = vmatpush1.msra.mxu0 0.0
    %1523 = vmatprep.subr.mxu0 0.0
    %1524 = vmatpush1.msra.mxu0 0.0
    %1525 = vmatprep.subr.mxu0 0.0
    %1526 = vmatpush1.msra.mxu0 0.0
    %1527 = vmatprep.subr.mxu0 0.0
    %1528 = vmatpush1.msra.mxu0 0.0
    %1529 = vmatprep.subr.mxu0 0.0
    %1530 = vmatpush1.msra.mxu0 0.0
    %1531 = vmatprep.subr.mxu0 0.0
    %1532 = vmatpush1.msra.mxu0 0.0
    %1533 = vmatprep.subr.mxu0 0.0
    %1534 = vmatpush1.msra.mxu0 0.0
    %1535 = vmatprep.subr.mxu0 0.0
    %1536 = vmatpush1.msra.mxu0 0.0
    %1537 = vmatprep.subr.mxu0 0.0
    %1538 = vmatpush1.msra.mxu0 0.0
    %1539 = vmatprep.subr.mxu0 0.0
    %1540 = vmatpush1.msra.mxu0 0.0
    %1541 = vmatprep.subr.mxu0 0.0
    %1542 = vmatpush1.msra.mxu0 0.0
    %1543 = vmatprep.subr.mxu0 0.0
    %1544 = vmatpush1.msra.mxu0 0.0
    %1545 = vmatprep.subr.mxu0 0.0
    %1546 = vmatpush1.msra.mxu0 0.0
    %1547 = vmatprep.subr.mxu0 0.0
    %1548 = vmatpush1.msra.mxu0 0.0
    %1549 = vmatprep.subr.mxu0 0.0
    %1550 = vmatpush1.msra.mxu0 0.0
    %1551 = vmatprep.subr.mxu0 0.0
    %1552 = vmatpush1.msra.mxu0 0.0
    %1553 = vmatprep.subr.mxu0 0.0
    %1554 = vmatpush1.msra.mxu0 0.0
    %1555 = vmatprep.subr.mxu0 0.0
    %1556 = vmatpush1.msra.mxu0 0.0
    %1557 = vmatprep.subr.mxu0 0.0
    %1558 = vmatpush1.msra.mxu0 0.0
    %1559 = vmatprep.subr.mxu0 0.0
    %1560 = vmatpush1.msra.mxu0 0.0
    %1561 = vmatprep.subr.mxu0 0.0
    %1562 = vmatpush1.msra.mxu0 0.0
    %1563 = vmatprep.subr.mxu0 0.0
    %1564 = vmatpush1.msra.mxu0 0.0
    %1565 = vmatprep.subr.mxu0 0.0
    %1566 = vmatpush1.msra.mxu0 0.0
    %1567 = vmatprep.subr.mxu0 0.0
    %1568 = vmatpush1.msra.mxu0 0.0
    %1569 = vmatprep.subr.mxu0 0.0
    %1570 = vmatpush1.msra.mxu0 0.0
    %1571 = vmatprep.subr.mxu0 0.0
    %1572 = vmatpush1.msra.mxu0 0.0
    %1573 = vmatprep.subr.mxu0 0.0
    %1574 = vmatpush1.msra.mxu0 0.0
    %1575 = vmatprep.mubr.f32.mxu0 0.0
    %1576 = vmatmul.mubr.f32.gmra.mrb[0].mxu0 %v1439
    %v1577 = vpop.f32.mrb[0].mxu0
    %v1578 = vadd.f32 0.0, %v1577
    %v1579 = vpop.f32.mrb[0].mxu0
    %1580 = vdwg.mxu0
    %v1581 = vmul.f32 %v1435, 0.5
    %1583 = vrot.lane.b32.xlu0 %v1581, 8
    %v1584 = vpop.permute.xlu0 %1583
    %v1586 = vsub.f32 %v1170, %v1584
    %v1587 = vmul.f32 %v1508, 0.33333334
    %1589 = vrot.lane.b32.xlu0 %v1587, 8
    %v1590 = vpop.permute.xlu0 %1589
    %v1592 = vadd.f32 %v1586, %v1590
    %v1593 = vmul.f32 %v1578, 0.25
    %1595 = vrot.lane.b32.xlu0 %v1593, 8
    %v1596 = vpop.permute.xlu0 %1595
    %v1598 = vsub.f32 %v1592, %v1596
    %1600 = vrot.lane.b32.xlu0 %v1598, 120
    %v1601 = vpop.permute.xlu0 %1600
    %v1603 = vmul.f32 %v1169, %v1601
    %v1604 = vsel %vm583, %v1603, 0.0
    %1605 = vadd.xlane.f32.xlu0 %v1604
    %v1606 = vpop.xlane.xlu0 %1605
    %v1607 = vrot.slane %v1606, 4
    %v1608 = vadd.f32 %v1606, %v1607
    %v1609 = vrot.slane %v1608, 2
    %v1610 = vadd.f32 %v1608, %v1609
    %v1611 = vrot.slane %v1610, 1
    %v1612 = vadd.f32 %v1610, %v1611
    %s1613 = vtos %v1612
    %s1614 = ssub.f32 0.0, %s1613
    %v1615 = vmul.f32 %v441, %v1601
    %v1616 = vsel %vm583, %v1615, 0.0
    %1617 = vadd.xlane.f32.xlu0 %v1616
    %v1618 = vpop.xlane.xlu0 %1617
    %v1619 = vrot.slane %v1618, 4
    %v1620 = vadd.f32 %v1618, %v1619
    %v1621 = vrot.slane %v1620, 2
    %v1622 = vadd.f32 %v1620, %v1621
    %v1623 = vrot.slane %v1622, 1
    %v1624 = vadd.f32 %v1622, %v1623
    %s1625 = vtos %v1624
    %s1626 = ssub.f32 %s1614, %s1625
    %s1627 = sadd.f32 %s770, %s1361
    %s1628 = sadd.f32 %s1035, %s1626
    %s1629 = sadd.f32 %s1627, %s1628
    %s1630 = smul.f32 %s1629, 0.5
    %s1631 = scalar_lea.smem [#allocation11], 0
    %1632 = sst [smem:[%s1631]] %s1630
    // Predicated region
    $region42: #{matrixssl_forward.1} parent=1 // pred_check
      _
    $region43: #{matrixssl_forward.1} parent=1 // pred_check_branch
      %1634 = sbr.rel (0) target = $region45
    $region44: #{matrixssl_forward.1} parent=1 // pred_region
      %s1636 = ssub.s32 16, 16
      %1637 = vsyncadd [#allocation4], %s1636
      %1640 = dma.smem_to_hbm [#allocation11], 16, %s5, [#allocation4]
    $region45: #{matrixssl_forward.1} parent=1 // pred_fallthru
      _
    // Predicated region
    $region46: #{matrixssl_forward.1} parent=1 // pred_check
      _
    $region47: #{matrixssl_forward.1} parent=1 // pred_check_branch
      %1642 = sbr.rel (0) target = $region49
    $region48: #{matrixssl_forward.1} parent=1 // pred_region
      %1643 = dma.done [#allocation4], 16
    $region49: #{matrixssl_forward.1} parent=1 // pred_fallthru
      _
    %1644 = sfence
    %1645 = vsyncpa [#allocation3], 1
    %1646 = vsyncpa [#allocation6], 1
    %1647 = vsyncpa [#allocation9], 1
    %1648 = vsyncpa [#allocation4], 1

</llo_original>
